<compile_context>
chip_gen: v5e
topology: v5e:2x2
jax: 0.10.0
libtpu: 0.0.40
codegen_flags: <defaults>
</compile_context>

<pallas_src>
import functools

import jax
import jax.numpy as jnp
from jax import lax
from jax.experimental import pallas as pl
from jax.experimental.pallas import tpu as pltpu


# --------------------------------------------------------------------------
# Kernel
# --------------------------------------------------------------------------
def _resblock_kernel(x_ref, hidx_ref, t1_ref, b1_ref, t2_ref, b2_ref, o_ref,
                     *, img_h):
    """Fused residual block for one batch tile (batch folded into matmul M).

    x_ref   : (M, W*Cp)              lane-dense input rows, bf16 (M = batch_tile*H)
    hidx_ref: (M, 1)                 int32 within-image row index (0..H-1)
    t1_ref  : (K1*W*Cp, W*C1)        block-Toeplitz weights of conv1, bf16
    b1_ref  : (1, W*C1)              conv1 bias tiled across W, f32
    t2_ref  : (K2*W*C1 + W*Cp, W*C2) conv2 Toeplitz stacked over 1x1-shortcut, bf16
    b2_ref  : (1, W*C2)              conv2 bias tiled across W, f32
    o_ref   : (M, W*C2)              lane-dense output rows, f32
    """
    x = x_ref[...].astype(jnp.float32)            # (M, L0)
    m_rows, l0 = x.shape
    lc1 = b1_ref.shape[1]
    k1 = t1_ref.shape[0] // l0
    k2 = (t2_ref.shape[0] - l0) // lc1
    h_idx = hidx_ref[...]                         # (M, 1) int32, row index in image

    def shifted(mat, k):
        # (M, L) -> (M, K*L). Block ky holds rows h + ky - (k-1)//2 of the SAME
        # image, zero outside [0, H).  The row shift rides the XLU
        # (pltpu.roll along sublanes); image-boundary / wrapped rows are zeroed
        # with a cheap (M,1) select, so images in the folded batch never bleed.
        n, _ = mat.shape
        p = (k - 1) // 2
        blocks = []
        for ky in range(k):
            dy = ky - p
            if dy == 0:
                blocks.append(mat)
                continue
            rolled = pltpu.roll(mat, shift=(-dy) % n, axis=0)   # rolled[r] = mat[r+dy]
            valid = (h_idx >= -dy) & (h_idx < img_h - dy)       # 0 <= h+dy < H
            blocks.append(jnp.where(valid, rolled, 0.0))
        return jnp.concatenate(blocks, axis=1)

    # ---- conv1 (+bias, ReLU): one MXU matmul over M = batch_tile*H rows ----
    lhs1 = shifted(x, k1).astype(jnp.bfloat16)                  # (M, K1*W*Cp)
    h1 = jnp.dot(lhs1, t1_ref[...], preferred_element_type=jnp.float32)
    h1 = jnp.maximum(h1 + b1_ref[...], 0.0)                     # (M, W*C1) f32

    # ---- conv2 + folded 1x1 shortcut (+bias), then final ReLU ----
    lhs2 = jnp.concatenate([shifted(h1, k2), x], axis=1)        # (M, K2*W*C1 + W*Cp)
    lhs2 = lhs2.astype(jnp.bfloat16)
    out = jnp.dot(lhs2, t2_ref[...], preferred_element_type=jnp.float32)
    o_ref[...] = jnp.maximum(out + b2_ref[...], 0.0).astype(o_ref.dtype)


# --------------------------------------------------------------------------
# Parameter preprocessing (layout-only, input-independent)
# --------------------------------------------------------------------------
def _row_toeplitz(w_hwio, W):
    """(K,K,Cin,Cout) conv kernel -> (K*W*Cin, W*Cout) block-Toeplitz matrix.

    T[ky*W*Cin + wp*Cin + ci, w*Cout + co] = w[ky, wp - w + p, ci, co]
    (zero where kx = wp - w + p is out of range => W-direction 'same' padding).
    """
    K, Kx, Cin, Cout = w_hwio.shape
    assert K == Kx and K % 2 == 1, "square odd kernels only"
    p = (K - 1) // 2
    wq = jnp.arange(W)
    kx = jnp.arange(K)
    sel = (wq[None, :, None] == wq[None, None, :] + kx[:, None, None] - p)
    sel = sel.astype(w_hwio.dtype)
    t = jnp.einsum('kpw,ykic->ypiwc', sel, w_hwio)   # (Ky, Wp, Cin, W, Cout)
    return t.reshape(K * W * Cin, W * Cout)


def _shortcut_toeplitz(ws, W):
    """(Cin, Cout) 1x1 conv -> block-diagonal (W*Cin, W*Cout) matrix."""
    Cin, Cout = ws.shape
    eye = jnp.eye(W, dtype=ws.dtype)
    t = jnp.einsum('vw,ic->viwc', eye, ws)
    return t.reshape(W * Cin, W * Cout)


def _padded_cin(cin, W):
    """Smallest cp >= cin with W*cp a multiple of 128 (lane-dense slabs)."""
    cp = cin
    while (W * cp) % 128 != 0:
        cp += 1
    return cp


def prepare_resblock_params(params, *, W, cin):
    """Build bf16 Toeplitz weight matrices and f32 bias rows (params only)."""
    w1, b1, w2, b2, ws = params
    cp = _padded_cin(cin, W)
    w1p = jnp.pad(w1.astype(jnp.float32), ((0, 0), (0, 0), (0, cp - cin), (0, 0)))
    wsp = jnp.pad(ws.astype(jnp.float32), ((0, cp - cin), (0, 0)))

    t1 = _row_toeplitz(w1p, W).astype(jnp.bfloat16)                  # (K1*W*cp, W*C1)
    t2 = _row_toeplitz(w2.astype(jnp.float32), W)                    # (K2*W*C1, W*C2)
    tsc = _shortcut_toeplitz(wsp, W)                                 # (W*cp,   W*C2)
    t2_full = jnp.concatenate([t2, tsc], axis=0).astype(jnp.bfloat16)

    b1_row = jnp.tile(b1.astype(jnp.float32), W)[None, :]            # (1, W*C1)
    b2_row = jnp.tile(b2.astype(jnp.float32), W)[None, :]            # (1, W*C2)
    return dict(t1=t1, b1_row=b1_row, t2_full=t2_full, b2_row=b2_row, cp=cp)


# --------------------------------------------------------------------------
# Pallas wrapper on lane-dense row slabs (no layout transposes here)
# --------------------------------------------------------------------------
def residual_block_rows(x_rows, prep, *, img_h, batch_tile):
    """x_rows: (N*H, W*Cp) bf16 lane-dense rows -> (N*H, W*C2) f32."""
    n_rows, l0 = x_rows.shape
    assert n_rows % img_h == 0
    n_img = n_rows // img_h
    assert n_img % batch_tile == 0, "pad the batch to a multiple of batch_tile"
    tile_rows = batch_tile * img_h

    t1, b1_row = prep["t1"], prep["b1_row"]
    t2_full, b2_row = prep["t2_full"], prep["b2_row"]
    w_c1, w_c2 = b1_row.shape[1], b2_row.shape[1]
    assert l0 % 128 == 0 and w_c1 % 128 == 0 and w_c2 % 128 == 0

    # Within-image row index for boundary masking of the rolled slabs.
    h_idx = jnp.tile(jnp.arange(img_h, dtype=jnp.int32), n_img)[:, None]  # (N*H, 1)

    grid = (n_img // batch_tile,)
    kernel = functools.partial(_resblock_kernel, img_h=img_h)

    # NOTE(prod sizes): weights/bias specs below are grid-constant; at real
    # channel counts single-buffer them (pipeline_mode=pl.Buffered(1)), tile H
    # with a (K-1)-row halo, and set vmem_limit_bytes for v7x's 64 MiB VMEM.
    return pl.pallas_call(
        kernel,
        out_shape=jax.ShapeDtypeStruct((n_rows, w_c2), jnp.float32),
        grid=grid,
        in_specs=[
            pl.BlockSpec((tile_rows, l0), lambda n: (n, 0)),
            pl.BlockSpec((tile_rows, 1), lambda n: (n, 0)),
            pl.BlockSpec(t1.shape, lambda n: (0, 0)),
            pl.BlockSpec(b1_row.shape, lambda n: (0, 0)),
            pl.BlockSpec(t2_full.shape, lambda n: (0, 0)),
            pl.BlockSpec(b2_row.shape, lambda n: (0, 0)),
        ],
        out_specs=pl.BlockSpec((tile_rows, w_c2), lambda n: (n, 0)),
        compiler_params=pltpu.CompilerParams(
            dimension_semantics=("parallel",)),
    )(x_rows, h_idx, t1, b1_row, t2_full, b2_row)


def residual_block_forward(x_nchw, params, *, batch_tile):
    """PyTorch-parity harness wrapper (NCHW in/out).

    The NCHW<->NHWC transposes exist only here for parity with the PyTorch
    module; a surrounding network should call residual_block_rows directly on
    the lane-dense (N*H, W*C) layout and skip them.
    """
    _, _, _, _, ws = params
    N, Cin, H, W = x_nchw.shape
    C2 = ws.shape[-1]

    prep = prepare_resblock_params(params, W=W, cin=Cin)
    cp = prep["cp"]

    x = jnp.transpose(x_nchw, (0, 2, 3, 1)).astype(jnp.float32)       # NHWC
    x = jnp.pad(x, ((0, 0), (0, 0), (0, 0), (0, cp - Cin)))           # Cin -> cp
    x_rows = x.reshape(N * H, W * cp).astype(jnp.bfloat16)            # lane-dense bf16

    out_rows = residual_block_rows(x_rows, prep, img_h=H, batch_tile=batch_tile)
    return jnp.transpose(out_rows.reshape(N, H, W, C2), (0, 3, 1, 2))


# --------------------------------------------------------------------------
# Pure-JAX reference mirroring the module semantics (and the kernel's bf16
# quantization points, so the comparison stays tight).
# --------------------------------------------------------------------------
def _reference(x_nchw, params):
    w1, b1, w2, b2, ws = params
    bf = lambda a: a.astype(jnp.bfloat16).astype(jnp.float32)
    x = bf(jnp.transpose(x_nchw, (0, 2, 3, 1)).astype(jnp.float32))

    def conv(a, w, pad):
        return lax.conv_general_dilated(
            a, w, window_strides=(1, 1), padding=[(pad, pad), (pad, pad)],
            dimension_numbers=('NHWC', 'HWIO', 'NHWC'),
            precision=lax.Precision.HIGHEST)

    h = jax.nn.relu(conv(x, bf(w1), (w1.shape[0] - 1) // 2) + b1)
    out = conv(bf(h), bf(w2), (w2.shape[0] - 1) // 2) + b2
    out = jax.nn.relu(out + conv(x, bf(ws)[None, None, :, :], 0))
    return jnp.transpose(out, (0, 3, 1, 2))


if __name__ == "__main__":
    key = jax.random.PRNGKey(0)
    k = jax.random.split(key, 6)

    # channels=[8, 8], kernel_sizes=[3, 3], in_channels=4, 16x16 spatial.
    # Batch of 16 so 8 images fold into each matmul (M = 8*16 = 128 rows) and
    # the grid still has 2 steps (pipelining / both v7x TensorCores).
    N, Cin, H, W = 16, 4, 16, 16
    C1, C2, K = 8, 8, 3
    BATCH_TILE = 8

    x = jax.random.normal(k[0], (N, Cin, H, W), jnp.float32)

    # Deterministic synthetic parameters (HWIO weights, 1-D biases).
    w1 = jax.random.normal(k[1], (K, K, Cin, C1), jnp.float32) * 0.1
    b1 = jax.random.normal(k[2], (C1,), jnp.float32) * 0.1
    w2 = jax.random.normal(k[3], (K, K, C1, C2), jnp.float32) * 0.1
    b2 = jax.random.normal(k[4], (C2,), jnp.float32) * 0.1
    ws = jax.random.normal(k[5], (Cin, C2), jnp.float32) * 0.1  # 1x1 shortcut, no bias
    params = (w1, b1, w2, b2, ws)

    out = residual_block_forward(x, params, batch_tile=BATCH_TILE)
    jax.block_until_ready(out)

    ref = _reference(x, params)
    assert out.shape == (N, C2, H, W), out.shape
    err = float(jnp.max(jnp.abs(out - ref)))
    assert err < 2e-2, f"max abs err = {err}"

    print("KERNEL_OK")
</pallas_src>

<mosaic_0001>
module attributes {stable_mosaic.version = 11 : i64} {
  func.func @_resblock_kernel(%arg0: i32, %arg1: memref<128x128xbf16, #tpu.memory_space<vmem>>, %arg2: memref<128x1xi32, #tpu.memory_space<vmem>>, %arg3: memref<384x128xbf16, #tpu.memory_space<vmem>>, %arg4: memref<1x128xf32, #tpu.memory_space<vmem>>, %arg5: memref<512x128xbf16, #tpu.memory_space<vmem>>, %arg6: memref<1x128xf32, #tpu.memory_space<vmem>>, %arg7: memref<128x128xf32, #tpu.memory_space<vmem>>) attributes {dimension_semantics = [#tpu.dimension_semantics<parallel>], iteration_bounds = array<i64: 2>, scalar_prefetch = 0 : i64, scratch_operands = 0 : i64, tpu.core_type = #tpu.core_type<tc>, window_params = [{transform_indices = @transform_0, window_bounds = array<i64: 128, 128>}, {transform_indices = @transform_1, window_bounds = array<i64: 128, 1>}, {pipeline_mode = #tpu.pipeline_mode<synchronous>, transform_indices = @transform_2, window_bounds = array<i64: 384, 128>}, {pipeline_mode = #tpu.pipeline_mode<synchronous>, transform_indices = @transform_3, window_bounds = array<i64: 1, 128>}, {pipeline_mode = #tpu.pipeline_mode<synchronous>, transform_indices = @transform_4, window_bounds = array<i64: 512, 128>}, {pipeline_mode = #tpu.pipeline_mode<synchronous>, transform_indices = @transform_5, window_bounds = array<i64: 1, 128>}, {transform_indices = @transform_6, window_bounds = array<i64: 128, 128>}]} {
    %c0 = arith.constant 0 : index
    %c0_0 = arith.constant 0 : index
    %0 = vector.load %arg1[%c0, %c0_0] : memref<128x128xbf16, #tpu.memory_space<vmem>>, vector<128x128xbf16>
    %1 = arith.extf %0 : vector<128x128xbf16> to vector<128x128xf32>
    %c0_1 = arith.constant 0 : index
    %c0_2 = arith.constant 0 : index
    %2 = vector.load %arg2[%c0_1, %c0_2] : memref<128x1xi32, #tpu.memory_space<vmem>>, vector<128x1xi32>
    %c1_i32 = arith.constant 1 : i32
    %3 = tpu.dynamic_rotate %1 by %c1_i32 dim 0 : vector<128x128xf32>, i32 -> vector<128x128xf32>
    %c1_i32_3 = arith.constant 1 : i32
    %4 = vector.broadcast %c1_i32_3 : i32 to vector<128x1xi32>
    %5 = arith.cmpi sge, %2, %4 : vector<128x1xi32>
    %c17_i32 = arith.constant 17 : i32
    %6 = vector.broadcast %c17_i32 : i32 to vector<128x1xi32>
    %7 = arith.cmpi slt, %2, %6 : vector<128x1xi32>
    %8 = arith.andi %5, %7 : vector<128x1xi1>
    %cst = arith.constant 0.000000e+00 : f32
    %9 = vector.shape_cast %8 : vector<128x1xi1> to vector<128x1xi1>
    %10 = vector.broadcast %9 : vector<128x1xi1> to vector<128x128xi1>
    %11 = vector.broadcast %cst : f32 to vector<128x128xf32>
    %12 = arith.select %10, %3, %11 : vector<128x128xi1>, vector<128x128xf32>
    %c127_i32 = arith.constant 127 : i32
    %13 = tpu.dynamic_rotate %1 by %c127_i32 dim 0 : vector<128x128xf32>, i32 -> vector<128x128xf32>
    %c-1_i32 = arith.constant -1 : i32
    %14 = vector.broadcast %c-1_i32 : i32 to vector<128x1xi32>
    %15 = arith.cmpi sge, %2, %14 : vector<128x1xi32>
    %c15_i32 = arith.constant 15 : i32
    %16 = vector.broadcast %c15_i32 : i32 to vector<128x1xi32>
    %17 = arith.cmpi slt, %2, %16 : vector<128x1xi32>
    %18 = arith.andi %15, %17 : vector<128x1xi1>
    %cst_4 = arith.constant 0.000000e+00 : f32
    %19 = vector.shape_cast %18 : vector<128x1xi1> to vector<128x1xi1>
    %20 = vector.broadcast %19 : vector<128x1xi1> to vector<128x128xi1>
    %21 = vector.broadcast %cst_4 : f32 to vector<128x128xf32>
    %22 = arith.select %20, %13, %21 : vector<128x128xi1>, vector<128x128xf32>
    %23 = tpu.concatenate %12, %1, %22 in 1 : vector<128x128xf32>, vector<128x128xf32>, vector<128x128xf32> -> vector<128x384xf32>
    %24 = arith.truncf %23 : vector<128x384xf32> to vector<128x384xbf16>
    %c0_5 = arith.constant 0 : index
    %c0_6 = arith.constant 0 : index
    %25 = vector.load %arg3[%c0_5, %c0_6] : memref<384x128xbf16, #tpu.memory_space<vmem>>, vector<384x128xbf16>
    %cst_7 = arith.constant dense<0.000000e+00> : vector<128x128xf32>
    %26 = tpu.matmul %24, %25, %cst_7 {dimension_numbers = #tpu.dot_dimension_numbers<[1], [0], [0], [1], [0, 0, 1, 1], [], []>} : vector<128x384xbf16>, vector<384x128xbf16>, vector<128x128xf32> -> vector<128x128xf32>
    %c0_8 = arith.constant 0 : index
    %c0_9 = arith.constant 0 : index
    %27 = vector.load %arg4[%c0_8, %c0_9] : memref<1x128xf32, #tpu.memory_space<vmem>>, vector<1x128xf32>
    %28 = vector.broadcast %27 : vector<1x128xf32> to vector<128x128xf32>
    %29 = arith.addf %26, %28 : vector<128x128xf32>
    %cst_10 = arith.constant 0.000000e+00 : f32
    %30 = vector.broadcast %cst_10 : f32 to vector<128x128xf32>
    %31 = arith.maximumf %29, %30 : vector<128x128xf32>
    %c1_i32_11 = arith.constant 1 : i32
    %32 = tpu.dynamic_rotate %31 by %c1_i32_11 dim 0 : vector<128x128xf32>, i32 -> vector<128x128xf32>
    %c1_i32_12 = arith.constant 1 : i32
    %33 = vector.broadcast %c1_i32_12 : i32 to vector<128x1xi32>
    %34 = arith.cmpi sge, %2, %33 : vector<128x1xi32>
    %c17_i32_13 = arith.constant 17 : i32
    %35 = vector.broadcast %c17_i32_13 : i32 to vector<128x1xi32>
    %36 = arith.cmpi slt, %2, %35 : vector<128x1xi32>
    %37 = arith.andi %34, %36 : vector<128x1xi1>
    %cst_14 = arith.constant 0.000000e+00 : f32
    %38 = vector.shape_cast %37 : vector<128x1xi1> to vector<128x1xi1>
    %39 = vector.broadcast %38 : vector<128x1xi1> to vector<128x128xi1>
    %40 = vector.broadcast %cst_14 : f32 to vector<128x128xf32>
    %41 = arith.select %39, %32, %40 : vector<128x128xi1>, vector<128x128xf32>
    %c127_i32_15 = arith.constant 127 : i32
    %42 = tpu.dynamic_rotate %31 by %c127_i32_15 dim 0 : vector<128x128xf32>, i32 -> vector<128x128xf32>
    %c-1_i32_16 = arith.constant -1 : i32
    %43 = vector.broadcast %c-1_i32_16 : i32 to vector<128x1xi32>
    %44 = arith.cmpi sge, %2, %43 : vector<128x1xi32>
    %c15_i32_17 = arith.constant 15 : i32
    %45 = vector.broadcast %c15_i32_17 : i32 to vector<128x1xi32>
    %46 = arith.cmpi slt, %2, %45 : vector<128x1xi32>
    %47 = arith.andi %44, %46 : vector<128x1xi1>
    %cst_18 = arith.constant 0.000000e+00 : f32
    %48 = vector.shape_cast %47 : vector<128x1xi1> to vector<128x1xi1>
    %49 = vector.broadcast %48 : vector<128x1xi1> to vector<128x128xi1>
    %50 = vector.broadcast %cst_18 : f32 to vector<128x128xf32>
    %51 = arith.select %49, %42, %50 : vector<128x128xi1>, vector<128x128xf32>
    %52 = tpu.concatenate %41, %31, %51 in 1 : vector<128x128xf32>, vector<128x128xf32>, vector<128x128xf32> -> vector<128x384xf32>
    %53 = tpu.concatenate %52, %1 in 1 : vector<128x384xf32>, vector<128x128xf32> -> vector<128x512xf32>
    %54 = arith.truncf %53 : vector<128x512xf32> to vector<128x512xbf16>
    %c0_19 = arith.constant 0 : index
    %c0_20 = arith.constant 0 : index
    %55 = vector.load %arg5[%c0_19, %c0_20] : memref<512x128xbf16, #tpu.memory_space<vmem>>, vector<512x128xbf16>
    %cst_21 = arith.constant dense<0.000000e+00> : vector<128x128xf32>
    %56 = tpu.matmul %54, %55, %cst_21 {dimension_numbers = #tpu.dot_dimension_numbers<[1], [0], [0], [1], [0, 0, 1, 1], [], []>} : vector<128x512xbf16>, vector<512x128xbf16>, vector<128x128xf32> -> vector<128x128xf32>
    %c0_22 = arith.constant 0 : index
    %c0_23 = arith.constant 0 : index
    %57 = vector.load %arg6[%c0_22, %c0_23] : memref<1x128xf32, #tpu.memory_space<vmem>>, vector<1x128xf32>
    %58 = vector.broadcast %57 : vector<1x128xf32> to vector<128x128xf32>
    %59 = arith.addf %56, %58 : vector<128x128xf32>
    %cst_24 = arith.constant 0.000000e+00 : f32
    %60 = vector.broadcast %cst_24 : f32 to vector<128x128xf32>
    %61 = arith.maximumf %59, %60 : vector<128x128xf32>
    %c0_25 = arith.constant 0 : index
    %c0_26 = arith.constant 0 : index
    %62 = vector.load %arg7[%c0_25, %c0_26] : memref<128x128xf32, #tpu.memory_space<vmem>>, vector<128x128xf32>
    tpu.vector_store %arg7[%c0_25, %c0_26], %61 {strides = array<i32>} : memref<128x128xf32, #tpu.memory_space<vmem>>, vector<128x128xf32>,
    return
  }
  func.func @transform_0(%arg0: i32) -> (i32, i32) {
    %c0_i32 = arith.constant 0 : i32
    %c0_i32_0 = arith.constant 0 : i32
    return %arg0, %c0_i32 : i32, i32
  }
  func.func @transform_1(%arg0: i32) -> (i32, i32) {
    %c0_i32 = arith.constant 0 : i32
    %c0_i32_0 = arith.constant 0 : i32
    return %arg0, %c0_i32 : i32, i32
  }
  func.func @transform_2(%arg0: i32) -> (i32, i32) {
    %c0_i32 = arith.constant 0 : i32
    %c0_i32_0 = arith.constant 0 : i32
    %c0_i32_1 = arith.constant 0 : i32
    return %c0_i32, %c0_i32_0 : i32, i32
  }
  func.func @transform_3(%arg0: i32) -> (i32, i32) {
    %c0_i32 = arith.constant 0 : i32
    %c0_i32_0 = arith.constant 0 : i32
    %c0_i32_1 = arith.constant 0 : i32
    return %c0_i32, %c0_i32_0 : i32, i32
  }
  func.func @transform_4(%arg0: i32) -> (i32, i32) {
    %c0_i32 = arith.constant 0 : i32
    %c0_i32_0 = arith.constant 0 : i32
    %c0_i32_1 = arith.constant 0 : i32
    return %c0_i32, %c0_i32_0 : i32, i32
  }
  func.func @transform_5(%arg0: i32) -> (i32, i32) {
    %c0_i32 = arith.constant 0 : i32
    %c0_i32_0 = arith.constant 0 : i32
    %c0_i32_1 = arith.constant 0 : i32
    return %c0_i32, %c0_i32_0 : i32, i32
  }
  func.func @transform_6(%arg0: i32) -> (i32, i32) {
    %c0_i32 = arith.constant 0 : i32
    %c0_i32_0 = arith.constant 0 : i32
    return %arg0, %c0_i32 : i32, i32
  }
}

</mosaic_0001>

<llo_original>
// kernel: tpu_custom_call.1
$region0: #{tpu_custom_call.1}
  #allocation0 [shape = 'u32[]', space=smem, size = 0x4, offset = 0x4, fixed_abs, tag = 'smem constant byte address 0x4 - core index']
  #allocation1 [shape = 'u32[72,128]{1,0:T(1,128)}', space=vmem, size = 0x9000, scoped, tag = 'internal scratch']
  %s0 = inlined_call_operand.hbm [shape: bf16[256,128], index: 0, kind: input, shape index: {}]
  %s1 = inlined_call_operand.vmem [shape: s32[256,1], index: 1, kind: input, shape index: {}]
  %s2 = inlined_call_operand.hbm [shape: bf16[384,128], index: 2, kind: input, shape index: {}]
  %s3 = inlined_call_operand.vmem [shape: f32[1,128], index: 3, kind: input, shape index: {}]
  %s4 = inlined_call_operand.vmem [shape: bf16[512,128], index: 4, kind: input, shape index: {}]
  %s5 = inlined_call_operand.vmem [shape: f32[1,128], index: 5, kind: input, shape index: {}]
  %s6 = inlined_call_operand.hbm [shape: f32[256,128], index: 6, kind: output, shape index: {}]
  %s7 = sld [smem:[#allocation0]]
  $region65: #{tpu_custom_call.1} parent=0
    _
  %s9 = ssub.s32 1, %s7
  %s10 = scalar_select 0, %s9, %s7
  $region1: #{tpu_custom_call.1} parent=0
    #allocation2 [shape = 'u8[65536]{0}', space=vmem, size = 0x10000, scoped, tag = 'input window, operand 0']
    #allocation3 [shape = 's32[2]{0}', space=sflag, size = 0x8, scoped, tag = 'scoped memory for tpu_custom_call.1']
    #allocation4 [shape = 's32[2]{0}', space=sflag, size = 0x8, scoped, tag = 'scoped memory for tpu_custom_call.1']
    #allocation5 [shape = 'u8[98304]{0}', space=vmem, size = 0x18000, scoped, tag = 'input window, operand 2, single buffered']
    #allocation6 [shape = 's32[1]{0}', space=sflag, size = 0x4, scoped, tag = 'scoped memory for tpu_custom_call.1']
    #allocation7 [shape = 'u8[131072]{0}', space=vmem, size = 0x20000, scoped, tag = 'output window, operand 0']
    %11 = vsyncpa [#allocation3], 0
    %s12 = scalar_lea.sflag [#allocation3], 1
    %13 = vsyncpa %s12, 0
    %14 = vsyncpa [#allocation6], 0
    %15 = vsyncpa [#allocation4], 0
    %s16 = scalar_lea.sflag [#allocation4], 1
    %17 = vsyncpa %s16, 0
    loop: start=0, step=1, limit=4
    $region2: #{tpu_custom_call.1} parent=1 // loop_pre_header
      _
    $region3: #{tpu_custom_call.1} parent=1 // loop_header
      %s19 = sphi 0, %s23
      %p20 = scmp.ge.s32.totalorder %s19, 4
      %s29 = sphi 0, %s31
      %s32 = sphi 0, %s29
      %s33 = sphi 0, %s32
      %s49 = sphi 0, %s33
      %s55 = sphi 0, %s57
      %s58 = sphi 0, %s55
      %s59 = sphi 0, %s58
      %s75 = sphi 0, %s59
      %s79 = sphi 0, %s79
      %s81 = sphi 0, %s79
      %s82 = sphi 0, %s81
      %s96 = sphi 0, %s82
      %s100 = sphi 0, %s100
      %s102 = sphi 0, %s100
      %s103 = sphi 0, %s102
      %s117 = sphi 0, %s103
      %s121 = sphi 0, %s121
      %s123 = sphi 0, %s121
      %s124 = sphi 0, %s123
      %s138 = sphi 0, %s124
      %s142 = sphi 0, %s142
      %s144 = sphi 0, %s142
      %s145 = sphi 0, %s144
      %s159 = sphi 0, %s145
      %s165 = sphi 0, %s167
      %s168 = sphi 0, %s165
      %s169 = sphi 0, %s168
      %s185 = sphi 0, %s169
    $region4: #{tpu_custom_call.1} parent=1 // loop_header_branch
      %22 = sbr.rel (%p20) target = $region8
    $region5: #{tpu_custom_call.1} parent=1 // loop_body
      %s24 = ssub.s32 %s19, 1
      %s25 = ssub.s32 %s19, 2
      %s26 = sadd.s32 %s19, 1
      %s27 = ssub.s32 %s19, %s26
      %p28 = scmp.eq.s32.totalorder %s27, 0
      %s30 = sadd.s32 %s29, 1
      %s31 = scalar_select %p28, %s29, %s30
      %p34 = pneg %p28
      %p35 = scmp.eq.s32.totalorder %s19, 1
      %p36 = por %p34, %p35
      %p37 = scmp.ne.s32.totalorder %s29, %s32
      %p38 = scmp.eq.s32.totalorder %s19, 0
      %p39 = por %p37, %p38
      %p40 = scmp.ne.s32.totalorder %s29, %s32
      %p41 = scmp.eq.s32.totalorder %s24, 1
      %p42 = por %p40, %p41
      %p43 = scmp.ne.s32.totalorder %s32, %s33
      %p44 = scmp.eq.s32.totalorder %s24, 0
      %p45 = por %p43, %p44
      %p46 = scmp.ne.s32.totalorder %s32, %s33
      %p47 = scmp.eq.s32.totalorder %s25, 1
      %p48 = por %p46, %p47
      %p50 = scmp.ne.s32.totalorder %s33, %s49
      %p51 = scmp.eq.s32.totalorder %s25, 0
      %p52 = por %p50, %p51
      %s53 = ssub.s32 %s19, %s26
      %p54 = scmp.eq.s32.totalorder %s53, 0
      %s56 = sadd.s32 %s55, 1
      %s57 = scalar_select %p54, %s55, %s56
      %p60 = pneg %p54
      %p61 = scmp.eq.s32.totalorder %s19, 1
      %p62 = por %p60, %p61
      %p63 = scmp.ne.s32.totalorder %s55, %s58
      %p64 = scmp.eq.s32.totalorder %s19, 0
      %p65 = por %p63, %p64
      %p66 = scmp.ne.s32.totalorder %s55, %s58
      %p67 = scmp.eq.s32.totalorder %s24, 1
      %p68 = por %p66, %p67
      %p69 = scmp.ne.s32.totalorder %s58, %s59
      %p70 = scmp.eq.s32.totalorder %s24, 0
      %p71 = por %p69, %p70
      %p72 = scmp.ne.s32.totalorder %s58, %s59
      %p73 = scmp.eq.s32.totalorder %s25, 1
      %p74 = por %p72, %p73
      %p76 = scmp.ne.s32.totalorder %s59, %s75
      %p77 = scmp.eq.s32.totalorder %s25, 0
      %p78 = por %p76, %p77
      %s80 = sadd.s32 %s79, 1
      %p83 = scmp.eq.s32.totalorder %s19, 1
      %p84 = scmp.ne.s32.totalorder %s79, %s81
      %p85 = scmp.eq.s32.totalorder %s19, 0
      %p86 = por %p84, %p85
      %p87 = scmp.ne.s32.totalorder %s79, %s81
      %p88 = scmp.eq.s32.totalorder %s24, 1
      %p89 = por %p87, %p88
      %p90 = scmp.ne.s32.totalorder %s81, %s82
      %p91 = scmp.eq.s32.totalorder %s24, 0
      %p92 = por %p90, %p91
      %p93 = scmp.ne.s32.totalorder %s81, %s82
      %p94 = scmp.eq.s32.totalorder %s25, 1
      %p95 = por %p93, %p94
      %p97 = scmp.ne.s32.totalorder %s82, %s96
      %p98 = scmp.eq.s32.totalorder %s25, 0
      %p99 = por %p97, %p98
      %s101 = sadd.s32 %s100, 1
      %p104 = scmp.eq.s32.totalorder %s19, 1
      %p105 = scmp.ne.s32.totalorder %s100, %s102
      %p106 = scmp.eq.s32.totalorder %s19, 0
      %p107 = por %p105, %p106
      %p108 = scmp.ne.s32.totalorder %s100, %s102
      %p109 = scmp.eq.s32.totalorder %s24, 1
      %p110 = por %p108, %p109
      %p111 = scmp.ne.s32.totalorder %s102, %s103
      %p112 = scmp.eq.s32.totalorder %s24, 0
      %p113 = por %p111, %p112
      %p114 = scmp.ne.s32.totalorder %s102, %s103
      %p115 = scmp.eq.s32.totalorder %s25, 1
      %p116 = por %p114, %p115
      %p118 = scmp.ne.s32.totalorder %s103, %s117
      %p119 = scmp.eq.s32.totalorder %s25, 0
      %p120 = por %p118, %p119
      %s122 = sadd.s32 %s121, 1
      %p125 = scmp.eq.s32.totalorder %s19, 1
      %p126 = scmp.ne.s32.totalorder %s121, %s123
      %p127 = scmp.eq.s32.totalorder %s19, 0
      %p128 = por %p126, %p127
      %p129 = scmp.ne.s32.totalorder %s121, %s123
      %p130 = scmp.eq.s32.totalorder %s24, 1
      %p131 = por %p129, %p130
      %p132 = scmp.ne.s32.totalorder %s123, %s124
      %p133 = scmp.eq.s32.totalorder %s24, 0
      %p134 = por %p132, %p133
      %p135 = scmp.ne.s32.totalorder %s123, %s124
      %p136 = scmp.eq.s32.totalorder %s25, 1
      %p137 = por %p135, %p136
      %p139 = scmp.ne.s32.totalorder %s124, %s138
      %p140 = scmp.eq.s32.totalorder %s25, 0
      %p141 = por %p139, %p140
      %s143 = sadd.s32 %s142, 1
      %p146 = scmp.eq.s32.totalorder %s19, 1
      %p147 = scmp.ne.s32.totalorder %s142, %s144
      %p148 = scmp.eq.s32.totalorder %s19, 0
      %p149 = por %p147, %p148
      %p150 = scmp.ne.s32.totalorder %s142, %s144
      %p151 = scmp.eq.s32.totalorder %s24, 1
      %p152 = por %p150, %p151
      %p153 = scmp.ne.s32.totalorder %s144, %s145
      %p154 = scmp.eq.s32.totalorder %s24, 0
      %p155 = por %p153, %p154
      %p156 = scmp.ne.s32.totalorder %s144, %s145
      %p157 = scmp.eq.s32.totalorder %s25, 1
      %p158 = por %p156, %p157
      %p160 = scmp.ne.s32.totalorder %s145, %s159
      %p161 = scmp.eq.s32.totalorder %s25, 0
      %p162 = por %p160, %p161
      %s163 = ssub.s32 %s19, %s26
      %p164 = scmp.eq.s32.totalorder %s163, 0
      %s166 = sadd.s32 %s165, 1
      %s167 = scalar_select %p164, %s165, %s166
      %p170 = pneg %p164
      %p171 = scmp.eq.s32.totalorder %s19, 1
      %p172 = por %p170, %p171
      %p173 = scmp.ne.s32.totalorder %s165, %s168
      %p174 = scmp.eq.s32.totalorder %s19, 0
      %p175 = por %p173, %p174
      %p176 = scmp.ne.s32.totalorder %s165, %s168
      %p177 = scmp.eq.s32.totalorder %s24, 1
      %p178 = por %p176, %p177
      %p179 = scmp.ne.s32.totalorder %s168, %s169
      %p180 = scmp.eq.s32.totalorder %s24, 0
      %p181 = por %p179, %p180
      %p182 = scmp.ne.s32.totalorder %s168, %s169
      %p183 = scmp.eq.s32.totalorder %s25, 1
      %p184 = por %p182, %p183
      %p186 = scmp.ne.s32.totalorder %s169, %s185
      %p187 = scmp.eq.s32.totalorder %s25, 0
      %p188 = por %p186, %p187
      %p189 = scmp.le.s32.totalorder 1, %s19
      %p190 = scmp.lt.s32.totalorder %s19, 3
      %p191 = pnand %p189, %p190
      %p192 = pneg %p191
      // Predicated region
      $region9: #{tpu_custom_call.1} parent=5 // pred_check
        _
      $region10: #{tpu_custom_call.1} parent=5 // pred_check_branch
        %194 = sbr.rel (%p191) target = $region12
      $region11: #{tpu_custom_call.1} parent=5 // pred_region
        %s195 = ssub.s32 %s19, 1
        // Predicated region
        $region13: #{tpu_custom_call.1} parent=11 // pred_check
          %p196 = pneg %p92
        $region14: #{tpu_custom_call.1} parent=11 // pred_check_branch
          %198 = sbr.rel (%p196) target = $region16
        $region15: #{tpu_custom_call.1} parent=11 // pred_region
          %200 = vsyncadd [#allocation6], 0
          %s201 = sshll.u32 %s2, 4
          %s202 = int_to_ptr.hbm [resolvable:$true] %s201
          %s203 = sshll.u32 [#allocation5], 4
          %s204 = int_to_ptr.vmem [resolvable:$true] %s203
          %209 = dma.hbm_to_vmem [thread:$0]  %s202, 3072, %s204, [#allocation6], 64, 64, 4
        $region16: #{tpu_custom_call.1} parent=11 // pred_fallthru
          _
        // Predicated region
        $region17: #{tpu_custom_call.1} parent=11 // pred_check
          %p210 = pneg %p113
        $region18: #{tpu_custom_call.1} parent=11 // pred_check_branch
          %212 = sbr.rel (%p210) target = $region20
        $region19: #{tpu_custom_call.1} parent=11 // pred_region
          _
        $region20: #{tpu_custom_call.1} parent=11 // pred_fallthru
          _
        // Predicated region
        $region21: #{tpu_custom_call.1} parent=11 // pred_check
          %p213 = pneg %p134
        $region22: #{tpu_custom_call.1} parent=11 // pred_check_branch
          %215 = sbr.rel (%p213) target = $region24
        $region23: #{tpu_custom_call.1} parent=11 // pred_region
          _
        $region24: #{tpu_custom_call.1} parent=11 // pred_fallthru
          _
        // Predicated region
        $region25: #{tpu_custom_call.1} parent=11 // pred_check
          %p216 = pneg %p155
        $region26: #{tpu_custom_call.1} parent=11 // pred_check_branch
          %218 = sbr.rel (%p216) target = $region28
        $region27: #{tpu_custom_call.1} parent=11 // pred_region
          _
        $region28: #{tpu_custom_call.1} parent=11 // pred_fallthru
          _
      $region12: #{tpu_custom_call.1} parent=5 // pred_fallthru
        _
      %p219 = scmp.lt.s32.totalorder %s19, 2
      // Predicated region
      $region29: #{tpu_custom_call.1} parent=5 // pred_check
        %p220 = pneg %p219
      $region30: #{tpu_custom_call.1} parent=5 // pred_check_branch
        %222 = sbr.rel (%p220) target = $region32
      $region31: #{tpu_custom_call.1} parent=5 // pred_region
        // Predicated region
        $region33: #{tpu_custom_call.1} parent=31 // pred_check
          %p223 = pneg %p39
        $region34: #{tpu_custom_call.1} parent=31 // pred_check_branch
          %225 = sbr.rel (%p223) target = $region36
        $region35: #{tpu_custom_call.1} parent=31 // pred_region
          %s226 = sand.u32 %s29, 1
          %s227 = scalar_lea.sflag [#allocation3], %s226
          %s228 = sand.u32 %s29, 1
          %s229 = smul.addr %s228, 64
          %s230 = scalar_lea.vmem [#allocation2], %s229
          %s231 = smul.u32 16, %s19
          %233 = vsyncadd %s227, 0
          %s234 = smul.addr %s231, 4
          %s235 = scalar_lea.hbm %s0, %s234
          %s236 = sshll.u32 %s235, 4
          %s237 = int_to_ptr.hbm [resolvable:$true] %s236
          %s238 = sshll.u32 %s230, 4
          %s239 = int_to_ptr.vmem [resolvable:$true] %s238
          %244 = dma.hbm_to_vmem [thread:$0]  %s237, 1024, %s239, %s227, 64, 64, 4
        $region36: #{tpu_custom_call.1} parent=31 // pred_fallthru
          _
        // Predicated region
        $region37: #{tpu_custom_call.1} parent=31 // pred_check
          %p245 = pneg %p65
        $region38: #{tpu_custom_call.1} parent=31 // pred_check_branch
          %247 = sbr.rel (%p245) target = $region40
        $region39: #{tpu_custom_call.1} parent=31 // pred_region
          %s248 = smul.u32 16, %s19
          %p249 = scmp.lt.s32.totalorder %s248, 31
          %s250 = scalar_select %p249, %s248, 31
          %s251 = smul.addr %s250, 8
          %s252 = scalar_lea.vmem %s1, %s251
          %s253 = smul.u32 16, %s19
        $region40: #{tpu_custom_call.1} parent=31 // pred_fallthru
          _
      $region32: #{tpu_custom_call.1} parent=5 // pred_fallthru
        _
      %p254 = scmp.le.s32.totalorder 1, %s19
      %p255 = scmp.lt.s32.totalorder %s19, 3
      %p256 = pnand %p254, %p255
      %p257 = pneg %p256
      // Predicated region
      $region41: #{tpu_custom_call.1} parent=5 // pred_check
        _
      $region42: #{tpu_custom_call.1} parent=5 // pred_check_branch
        %259 = sbr.rel (%p256) target = $region44
      $region43: #{tpu_custom_call.1} parent=5 // pred_region
        %s260 = ssub.s32 %s19, 1
        %s261 = sand.u32 %s32, 1
        %s262 = scalar_lea.sflag [#allocation3], %s261
        %s263 = sand.u32 %s32, 1
        %s264 = smul.addr %s263, 64
        %s265 = scalar_lea.vmem [#allocation2], %s264
        // Predicated region
        $region45: #{tpu_custom_call.1} parent=43 // pred_check
          %p266 = pneg %p45
        $region46: #{tpu_custom_call.1} parent=43 // pred_check_branch
          %268 = sbr.rel (%p266) target = $region48
        $region47: #{tpu_custom_call.1} parent=43 // pred_region
          %270 = dma.done %s262, 1024
        $region48: #{tpu_custom_call.1} parent=43 // pred_fallthru
          _
        // Predicated region
        $region49: #{tpu_custom_call.1} parent=43 // pred_check
          %p271 = pneg %p92
        $region50: #{tpu_custom_call.1} parent=43 // pred_check_branch
          %273 = sbr.rel (%p271) target = $region52
        $region51: #{tpu_custom_call.1} parent=43 // pred_region
          %275 = dma.done [#allocation6], 3072
        $region52: #{tpu_custom_call.1} parent=43 // pred_fallthru
          _
        %s276 = sand.u32 %s32, 1
        %s277 = scalar_lea.sflag [#allocation3], %s276
        %s278 = sand.u32 %s32, 1
        %s279 = smul.addr %s278, 64
        %s280 = scalar_lea.vmem [#allocation2], %s279
        %p281 = pneg %p45
        %p282 = pneg %p42
        %s283 = smul.u32 16, %s24
        %p284 = scmp.lt.s32.totalorder %s283, 31
        %s285 = scalar_select %p284, %s283, 31
        %s286 = smul.addr %s285, 8
        %s287 = scalar_lea.vmem %s1, %s286
        %p288 = pneg %p71
        %p289 = pneg %p68
        %p290 = pneg %p92
        %p291 = pneg %p89
        %p292 = pneg %p113
        %p293 = pneg %p110
        %p294 = pneg %p134
        %p295 = pneg %p131
        %p296 = pneg %p155
        %p297 = pneg %p152
        %p298 = pneg %p181
        %p299 = pneg %p178
        %s300 = sand.u32 %s168, 1
        %s301 = scalar_lea.sflag [#allocation4], %s300
        %s302 = sand.u32 %s168, 1
        %s303 = smul.addr %s302, 128
        %s304 = scalar_lea.vmem [#allocation7], %s303
        %s305 = smul.u32 16, %s24
        %s306 = smul.u32 16, %s24
        %p307 = scmp.lt.s32.totalorder %s306, 31
        %s308 = scalar_select %p307, %s306, 31
        %s309 = smul.addr %s308, 8
        %s310 = scalar_lea.vmem %s1, %s309
        %s311 = smul.u32 16, %s24
        %s312 = smul.u32 16, %s24
        %v313 = vld [vmem:[%s265] sm:$0xf]
        %v314 = vld [vmem:[%s265 + $0x4] sm:$0xf]
        %v315 = vld [vmem:[%s265 + $0x8] sm:$0xf]
        %v316 = vld [vmem:[%s265 + $0xc] sm:$0xf]
        %v317 = vld [vmem:[%s265 + $0x10] sm:$0xf]
        %v318 = vld [vmem:[%s265 + $0x14] sm:$0xf]
        %v319 = vld [vmem:[%s265 + $0x18] sm:$0xf]
        %v320 = vld [vmem:[%s265 + $0x1c] sm:$0xf]
        %v321 = vld [vmem:[%s265 + $0x20] sm:$0xf]
        %v322 = vld [vmem:[%s265 + $0x24] sm:$0xf]
        %v323 = vld [vmem:[%s265 + $0x28] sm:$0xf]
        %v324 = vld [vmem:[%s265 + $0x2c] sm:$0xf]
        %v325 = vld [vmem:[%s265 + $0x30] sm:$0xf]
        %v326 = vld [vmem:[%s265 + $0x34] sm:$0xf]
        %v327 = vld [vmem:[%s265 + $0x38] sm:$0xf]
        %v328 = vld [vmem:[%s265 + $0x3c] sm:$0xf]
        %v329 = vunpack.c.l.bf16 %v313
        %v330 = vunpack.c.l.bf16 %v314
        %v331 = vunpack.c.l.bf16 %v315
        %v332 = vunpack.c.l.bf16 %v316
        %v333 = vunpack.c.l.bf16 %v317
        %v334 = vunpack.c.l.bf16 %v318
        %v335 = vunpack.c.l.bf16 %v319
        %v336 = vunpack.c.l.bf16 %v320
        %v337 = vunpack.c.l.bf16 %v321
        %v338 = vunpack.c.l.bf16 %v322
        %v339 = vunpack.c.l.bf16 %v323
        %v340 = vunpack.c.l.bf16 %v324
        %v341 = vunpack.c.l.bf16 %v325
        %v342 = vunpack.c.l.bf16 %v326
        %v343 = vunpack.c.l.bf16 %v327
        %v344 = vunpack.c.l.bf16 %v328
        %v345 = vld [vmem:[%s310] sm:$0xff]
        %v346 = vld [vmem:[%s310 + $0x8] sm:$0xff]
        %v347 = vld [vmem:[%s310 + $0x10] sm:$0xff]
        %v348 = vld [vmem:[%s310 + $0x18] sm:$0xff]
        %v349 = vld [vmem:[%s310 + $0x20] sm:$0xff]
        %v350 = vld [vmem:[%s310 + $0x28] sm:$0xff]
        %v351 = vld [vmem:[%s310 + $0x30] sm:$0xff]
        %v352 = vld [vmem:[%s310 + $0x38] sm:$0xff]
        %v353 = vld [vmem:[%s310 + $0x40] sm:$0xff]
        %v354 = vld [vmem:[%s310 + $0x48] sm:$0xff]
        %v355 = vld [vmem:[%s310 + $0x50] sm:$0xff]
        %v356 = vld [vmem:[%s310 + $0x58] sm:$0xff]
        %v357 = vld [vmem:[%s310 + $0x60] sm:$0xff]
        %v358 = vld [vmem:[%s310 + $0x68] sm:$0xff]
        %v359 = vld [vmem:[%s310 + $0x70] sm:$0xff]
        %v360 = vld [vmem:[%s310 + $0x78] sm:$0xff]
        %v361 = vrot.slane %v329, 7
        %v362 = vrot.slane %v330, 7
        %v363 = vrot.slane %v331, 7
        %v364 = vrot.slane %v332, 7
        %v365 = vrot.slane %v333, 7
        %v366 = vrot.slane %v334, 7
        %v367 = vrot.slane %v335, 7
        %v368 = vrot.slane %v336, 7
        %v369 = vrot.slane %v337, 7
        %v370 = vrot.slane %v338, 7
        %v371 = vrot.slane %v339, 7
        %v372 = vrot.slane %v340, 7
        %v373 = vrot.slane %v341, 7
        %v374 = vrot.slane %v342, 7
        %v375 = vrot.slane %v343, 7
        %v376 = vrot.slane %v344, 7
        %v377 = vlaneseq
        %v378 = vshrl.u32 %v377, 7
        %vm379 = vcmp.lt.s32.totalorder %v378, 1
        %v380 = vsel %vm379, %v375, %v376
        %v381 = vsel %vm379, %v374, %v375
        %v382 = vsel %vm379, %v373, %v374
        %v383 = vsel %vm379, %v372, %v373
        %v384 = vsel %vm379, %v371, %v372
        %v385 = vsel %vm379, %v370, %v371
        %v386 = vsel %vm379, %v369, %v370
        %v387 = vsel %vm379, %v368, %v369
        %v388 = vsel %vm379, %v367, %v368
        %v389 = vsel %vm379, %v366, %v367
        %v390 = vsel %vm379, %v365, %v366
        %v391 = vsel %vm379, %v364, %v365
        %v392 = vsel %vm379, %v363, %v364
        %v393 = vsel %vm379, %v362, %v363
        %v394 = vsel %vm379, %v361, %v362
        %v395 = vsel %vm379, %v376, %v361
        %vm396 = vcmp.ge.s32.totalorder %v345, 1
        %vm397 = vcmp.ge.s32.totalorder %v346, 1
        %vm398 = vcmp.ge.s32.totalorder %v347, 1
        %vm399 = vcmp.ge.s32.totalorder %v348, 1
        %vm400 = vcmp.ge.s32.totalorder %v349, 1
        %vm401 = vcmp.ge.s32.totalorder %v350, 1
        %vm402 = vcmp.ge.s32.totalorder %v351, 1
        %vm403 = vcmp.ge.s32.totalorder %v352, 1
        %vm404 = vcmp.ge.s32.totalorder %v353, 1
        %vm405 = vcmp.ge.s32.totalorder %v354, 1
        %vm406 = vcmp.ge.s32.totalorder %v355, 1
        %vm407 = vcmp.ge.s32.totalorder %v356, 1
        %vm408 = vcmp.ge.s32.totalorder %v357, 1
        %vm409 = vcmp.ge.s32.totalorder %v358, 1
        %vm410 = vcmp.ge.s32.totalorder %v359, 1
        %vm411 = vcmp.ge.s32.totalorder %v360, 1
        %vm412 = vcmp.lt.s32.totalorder %v345, 17
        %vm413 = vcmp.lt.s32.totalorder %v346, 17
        %vm414 = vcmp.lt.s32.totalorder %v347, 17
        %vm415 = vcmp.lt.s32.totalorder %v348, 17
        %vm416 = vcmp.lt.s32.totalorder %v349, 17
        %vm417 = vcmp.lt.s32.totalorder %v350, 17
        %vm418 = vcmp.lt.s32.totalorder %v351, 17
        %vm419 = vcmp.lt.s32.totalorder %v352, 17
        %vm420 = vcmp.lt.s32.totalorder %v353, 17
        %vm421 = vcmp.lt.s32.totalorder %v354, 17
        %vm422 = vcmp.lt.s32.totalorder %v355, 17
        %vm423 = vcmp.lt.s32.totalorder %v356, 17
        %vm424 = vcmp.lt.s32.totalorder %v357, 17
        %vm425 = vcmp.lt.s32.totalorder %v358, 17
        %vm426 = vcmp.lt.s32.totalorder %v359, 17
        %vm427 = vcmp.lt.s32.totalorder %v360, 17
        %vm428 = vmand %vm396, %vm412
        %vm429 = vmand %vm397, %vm413
        %vm430 = vmand %vm398, %vm414
        %vm431 = vmand %vm399, %vm415
        %vm432 = vmand %vm400, %vm416
        %vm433 = vmand %vm401, %vm417
        %vm434 = vmand %vm402, %vm418
        %vm435 = vmand %vm403, %vm419
        %vm436 = vmand %vm404, %vm420
        %vm437 = vmand %vm405, %vm421
        %vm438 = vmand %vm406, %vm422
        %vm439 = vmand %vm407, %vm423
        %vm440 = vmand %vm408, %vm424
        %vm441 = vmand %vm409, %vm425
        %vm442 = vmand %vm410, %vm426
        %vm443 = vmand %vm411, %vm427
        %v444 = vsel %vm428, 1, 0
        %v445 = vsel %vm429, 1, 0
        %v446 = vsel %vm430, 1, 0
        %v447 = vsel %vm431, 1, 0
        %v448 = vsel %vm432, 1, 0
        %v449 = vsel %vm433, 1, 0
        %v450 = vsel %vm434, 1, 0
        %v451 = vsel %vm435, 1, 0
        %v452 = vsel %vm436, 1, 0
        %v453 = vsel %vm437, 1, 0
        %v454 = vsel %vm438, 1, 0
        %v455 = vsel %vm439, 1, 0
        %v456 = vsel %vm440, 1, 0
        %v457 = vsel %vm441, 1, 0
        %v458 = vsel %vm442, 1, 0
        %v459 = vsel %vm443, 1, 0
        %460 = vset.pattern.permute.xlu0 0
        %461 = vperm.xlu0 %460, %v444
        %v462 = vpop.permute.xlu0 %461
        %463 = vset.pattern.permute.xlu0 0
        %464 = vperm.xlu0 %463, %v445
        %v465 = vpop.permute.xlu0 %464
        %466 = vset.pattern.permute.xlu0 0
        %467 = vperm.xlu0 %466, %v446
        %v468 = vpop.permute.xlu0 %467
        %469 = vset.pattern.permute.xlu0 0
        %470 = vperm.xlu0 %469, %v447
        %v471 = vpop.permute.xlu0 %470
        %472 = vset.pattern.permute.xlu0 0
        %473 = vperm.xlu0 %472, %v448
        %v474 = vpop.permute.xlu0 %473
        %475 = vset.pattern.permute.xlu0 0
        %476 = vperm.xlu0 %475, %v449
        %v477 = vpop.permute.xlu0 %476
        %478 = vset.pattern.permute.xlu0 0
        %479 = vperm.xlu0 %478, %v450
        %v480 = vpop.permute.xlu0 %479
        %481 = vset.pattern.permute.xlu0 0
        %482 = vperm.xlu0 %481, %v451
        %v483 = vpop.permute.xlu0 %482
        %484 = vset.pattern.permute.xlu0 0
        %485 = vperm.xlu0 %484, %v452
        %v486 = vpop.permute.xlu0 %485
        %487 = vset.pattern.permute.xlu0 0
        %488 = vperm.xlu0 %487, %v453
        %v489 = vpop.permute.xlu0 %488
        %490 = vset.pattern.permute.xlu0 0
        %491 = vperm.xlu0 %490, %v454
        %v492 = vpop.permute.xlu0 %491
        %493 = vset.pattern.permute.xlu0 0
        %494 = vperm.xlu0 %493, %v455
        %v495 = vpop.permute.xlu0 %494
        %496 = vset.pattern.permute.xlu0 0
        %497 = vperm.xlu0 %496, %v456
        %v498 = vpop.permute.xlu0 %497
        %499 = vset.pattern.permute.xlu0 0
        %500 = vperm.xlu0 %499, %v457
        %v501 = vpop.permute.xlu0 %500
        %502 = vset.pattern.permute.xlu0 0
        %503 = vperm.xlu0 %502, %v458
        %v504 = vpop.permute.xlu0 %503
        %505 = vset.pattern.permute.xlu0 0
        %506 = vperm.xlu0 %505, %v459
        %v507 = vpop.permute.xlu0 %506
        %vm508 = vcmp.eq.s32.totalorder %v462, 1
        %vm509 = vcmp.eq.s32.totalorder %v465, 1
        %vm510 = vcmp.eq.s32.totalorder %v468, 1
        %vm511 = vcmp.eq.s32.totalorder %v471, 1
        %vm512 = vcmp.eq.s32.totalorder %v474, 1
        %vm513 = vcmp.eq.s32.totalorder %v477, 1
        %vm514 = vcmp.eq.s32.totalorder %v480, 1
        %vm515 = vcmp.eq.s32.totalorder %v483, 1
        %vm516 = vcmp.eq.s32.totalorder %v486, 1
        %vm517 = vcmp.eq.s32.totalorder %v489, 1
        %vm518 = vcmp.eq.s32.totalorder %v492, 1
        %vm519 = vcmp.eq.s32.totalorder %v495, 1
        %vm520 = vcmp.eq.s32.totalorder %v498, 1
        %vm521 = vcmp.eq.s32.totalorder %v501, 1
        %vm522 = vcmp.eq.s32.totalorder %v504, 1
        %vm523 = vcmp.eq.s32.totalorder %v507, 1
        %v524 = vsel %vm508, %v395, 0.0
        %v525 = vsel %vm509, %v394, 0.0
        %v526 = vsel %vm510, %v393, 0.0
        %v527 = vsel %vm511, %v392, 0.0
        %v528 = vsel %vm512, %v391, 0.0
        %v529 = vsel %vm513, %v390, 0.0
        %v530 = vsel %vm514, %v389, 0.0
        %v531 = vsel %vm515, %v388, 0.0
        %v532 = vsel %vm516, %v387, 0.0
        %v533 = vsel %vm517, %v386, 0.0
        %v534 = vsel %vm518, %v385, 0.0
        %v535 = vsel %vm519, %v384, 0.0
        %v536 = vsel %vm520, %v383, 0.0
        %v537 = vsel %vm521, %v382, 0.0
        %v538 = vsel %vm522, %v381, 0.0
        %v539 = vsel %vm523, %v380, 0.0
        %v540 = vrot.slane %v329, 1
        %v541 = vrot.slane %v330, 1
        %v542 = vrot.slane %v331, 1
        %v543 = vrot.slane %v332, 1
        %v544 = vrot.slane %v333, 1
        %v545 = vrot.slane %v334, 1
        %v546 = vrot.slane %v335, 1
        %v547 = vrot.slane %v336, 1
        %v548 = vrot.slane %v337, 1
        %v549 = vrot.slane %v338, 1
        %v550 = vrot.slane %v339, 1
        %v551 = vrot.slane %v340, 1
        %v552 = vrot.slane %v341, 1
        %v553 = vrot.slane %v342, 1
        %v554 = vrot.slane %v343, 1
        %v555 = vrot.slane %v344, 1
        %vm556 = vcmp.lt.s32.totalorder %v378, 7
        %v557 = vsel %vm556, %v554, %v555
        %v558 = vsel %vm556, %v553, %v554
        %v559 = vsel %vm556, %v552, %v553
        %v560 = vsel %vm556, %v551, %v552
        %v561 = vsel %vm556, %v550, %v551
        %v562 = vsel %vm556, %v549, %v550
        %v563 = vsel %vm556, %v548, %v549
        %v564 = vsel %vm556, %v547, %v548
        %v565 = vsel %vm556, %v546, %v547
        %v566 = vsel %vm556, %v545, %v546
        %v567 = vsel %vm556, %v544, %v545
        %v568 = vsel %vm556, %v543, %v544
        %v569 = vsel %vm556, %v542, %v543
        %v570 = vsel %vm556, %v541, %v542
        %v571 = vsel %vm556, %v540, %v541
        %v572 = vsel %vm556, %v555, %v540
        %vm573 = vcmp.ge.s32.totalorder %v345, 4294967295
        %vm574 = vcmp.ge.s32.totalorder %v346, 4294967295
        %vm575 = vcmp.ge.s32.totalorder %v347, 4294967295
        %vm576 = vcmp.ge.s32.totalorder %v348, 4294967295
        %vm577 = vcmp.ge.s32.totalorder %v349, 4294967295
        %vm578 = vcmp.ge.s32.totalorder %v350, 4294967295
        %vm579 = vcmp.ge.s32.totalorder %v351, 4294967295
        %vm580 = vcmp.ge.s32.totalorder %v352, 4294967295
        %vm581 = vcmp.ge.s32.totalorder %v353, 4294967295
        %vm582 = vcmp.ge.s32.totalorder %v354, 4294967295
        %vm583 = vcmp.ge.s32.totalorder %v355, 4294967295
        %vm584 = vcmp.ge.s32.totalorder %v356, 4294967295
        %vm585 = vcmp.ge.s32.totalorder %v357, 4294967295
        %vm586 = vcmp.ge.s32.totalorder %v358, 4294967295
        %vm587 = vcmp.ge.s32.totalorder %v359, 4294967295
        %vm588 = vcmp.ge.s32.totalorder %v360, 4294967295
        %vm589 = vcmp.lt.s32.totalorder %v345, 15
        %vm590 = vcmp.lt.s32.totalorder %v346, 15
        %vm591 = vcmp.lt.s32.totalorder %v347, 15
        %vm592 = vcmp.lt.s32.totalorder %v348, 15
        %vm593 = vcmp.lt.s32.totalorder %v349, 15
        %vm594 = vcmp.lt.s32.totalorder %v350, 15
        %vm595 = vcmp.lt.s32.totalorder %v351, 15
        %vm596 = vcmp.lt.s32.totalorder %v352, 15
        %vm597 = vcmp.lt.s32.totalorder %v353, 15
        %vm598 = vcmp.lt.s32.totalorder %v354, 15
        %vm599 = vcmp.lt.s32.totalorder %v355, 15
        %vm600 = vcmp.lt.s32.totalorder %v356, 15
        %vm601 = vcmp.lt.s32.totalorder %v357, 15
        %vm602 = vcmp.lt.s32.totalorder %v358, 15
        %vm603 = vcmp.lt.s32.totalorder %v359, 15
        %vm604 = vcmp.lt.s32.totalorder %v360, 15
        %vm605 = vmand %vm573, %vm589
        %vm606 = vmand %vm574, %vm590
        %vm607 = vmand %vm575, %vm591
        %vm608 = vmand %vm576, %vm592
        %vm609 = vmand %vm577, %vm593
        %vm610 = vmand %vm578, %vm594
        %vm611 = vmand %vm579, %vm595
        %vm612 = vmand %vm580, %vm596
        %vm613 = vmand %vm581, %vm597
        %vm614 = vmand %vm582, %vm598
        %vm615 = vmand %vm583, %vm599
        %vm616 = vmand %vm584, %vm600
        %vm617 = vmand %vm585, %vm601
        %vm618 = vmand %vm586, %vm602
        %vm619 = vmand %vm587, %vm603
        %vm620 = vmand %vm588, %vm604
        %v621 = vsel %vm605, 1, 0
        %v622 = vsel %vm606, 1, 0
        %v623 = vsel %vm607, 1, 0
        %v624 = vsel %vm608, 1, 0
        %v625 = vsel %vm609, 1, 0
        %v626 = vsel %vm610, 1, 0
        %v627 = vsel %vm611, 1, 0
        %v628 = vsel %vm612, 1, 0
        %v629 = vsel %vm613, 1, 0
        %v630 = vsel %vm614, 1, 0
        %v631 = vsel %vm615, 1, 0
        %v632 = vsel %vm616, 1, 0
        %v633 = vsel %vm617, 1, 0
        %v634 = vsel %vm618, 1, 0
        %v635 = vsel %vm619, 1, 0
        %v636 = vsel %vm620, 1, 0
        %637 = vset.pattern.permute.xlu0 0
        %638 = vperm.xlu0 %637, %v621
        %v639 = vpop.permute.xlu0 %638
        %640 = vset.pattern.permute.xlu0 0
        %641 = vperm.xlu0 %640, %v622
        %v642 = vpop.permute.xlu0 %641
        %643 = vset.pattern.permute.xlu0 0
        %644 = vperm.xlu0 %643, %v623
        %v645 = vpop.permute.xlu0 %644
        %646 = vset.pattern.permute.xlu0 0
        %647 = vperm.xlu0 %646, %v624
        %v648 = vpop.permute.xlu0 %647
        %649 = vset.pattern.permute.xlu0 0
        %650 = vperm.xlu0 %649, %v625
        %v651 = vpop.permute.xlu0 %650
        %652 = vset.pattern.permute.xlu0 0
        %653 = vperm.xlu0 %652, %v626
        %v654 = vpop.permute.xlu0 %653
        %655 = vset.pattern.permute.xlu0 0
        %656 = vperm.xlu0 %655, %v627
        %v657 = vpop.permute.xlu0 %656
        %658 = vset.pattern.permute.xlu0 0
        %659 = vperm.xlu0 %658, %v628
        %v660 = vpop.permute.xlu0 %659
        %661 = vset.pattern.permute.xlu0 0
        %662 = vperm.xlu0 %661, %v629
        %v663 = vpop.permute.xlu0 %662
        %664 = vset.pattern.permute.xlu0 0
        %665 = vperm.xlu0 %664, %v630
        %v666 = vpop.permute.xlu0 %665
        %667 = vset.pattern.permute.xlu0 0
        %668 = vperm.xlu0 %667, %v631
        %v669 = vpop.permute.xlu0 %668
        %670 = vset.pattern.permute.xlu0 0
        %671 = vperm.xlu0 %670, %v632
        %v672 = vpop.permute.xlu0 %671
        %673 = vset.pattern.permute.xlu0 0
        %674 = vperm.xlu0 %673, %v633
        %v675 = vpop.permute.xlu0 %674
        %676 = vset.pattern.permute.xlu0 0
        %677 = vperm.xlu0 %676, %v634
        %v678 = vpop.permute.xlu0 %677
        %679 = vset.pattern.permute.xlu0 0
        %680 = vperm.xlu0 %679, %v635
        %v681 = vpop.permute.xlu0 %680
        %682 = vset.pattern.permute.xlu0 0
        %683 = vperm.xlu0 %682, %v636
        %v684 = vpop.permute.xlu0 %683
        %vm685 = vcmp.eq.s32.totalorder %v639, 1
        %vm686 = vcmp.eq.s32.totalorder %v642, 1
        %vm687 = vcmp.eq.s32.totalorder %v645, 1
        %vm688 = vcmp.eq.s32.totalorder %v648, 1
        %vm689 = vcmp.eq.s32.totalorder %v651, 1
        %vm690 = vcmp.eq.s32.totalorder %v654, 1
        %vm691 = vcmp.eq.s32.totalorder %v657, 1
        %vm692 = vcmp.eq.s32.totalorder %v660, 1
        %vm693 = vcmp.eq.s32.totalorder %v663, 1
        %vm694 = vcmp.eq.s32.totalorder %v666, 1
        %vm695 = vcmp.eq.s32.totalorder %v669, 1
        %vm696 = vcmp.eq.s32.totalorder %v672, 1
        %vm697 = vcmp.eq.s32.totalorder %v675, 1
        %vm698 = vcmp.eq.s32.totalorder %v678, 1
        %vm699 = vcmp.eq.s32.totalorder %v681, 1
        %vm700 = vcmp.eq.s32.totalorder %v684, 1
        %v701 = vsel %vm685, %v571, 0.0
        %v702 = vsel %vm686, %v570, 0.0
        %v703 = vsel %vm687, %v569, 0.0
        %v704 = vsel %vm688, %v568, 0.0
        %v705 = vsel %vm689, %v567, 0.0
        %v706 = vsel %vm690, %v566, 0.0
        %v707 = vsel %vm691, %v565, 0.0
        %v708 = vsel %vm692, %v564, 0.0
        %v709 = vsel %vm693, %v563, 0.0
        %v710 = vsel %vm694, %v562, 0.0
        %v711 = vsel %vm695, %v561, 0.0
        %v712 = vsel %vm696, %v560, 0.0
        %v713 = vsel %vm697, %v559, 0.0
        %v714 = vsel %vm698, %v558, 0.0
        %v715 = vsel %vm699, %v557, 0.0
        %v716 = vsel %vm700, %v572, 0.0
        %v717 = vpack.c.bf16 %v525, %v524
        %v718 = vpack.c.bf16 %v330, %v329
        %v719 = vpack.c.bf16 %v702, %v701
        %v720 = vpack.c.bf16 %v527, %v526
        %v721 = vpack.c.bf16 %v332, %v331
        %v722 = vpack.c.bf16 %v704, %v703
        %v723 = vpack.c.bf16 %v529, %v528
        %v724 = vpack.c.bf16 %v334, %v333
        %v725 = vpack.c.bf16 %v706, %v705
        %v726 = vpack.c.bf16 %v531, %v530
        %v727 = vpack.c.bf16 %v336, %v335
        %v728 = vpack.c.bf16 %v708, %v707
        %v729 = vpack.c.bf16 %v533, %v532
        %v730 = vpack.c.bf16 %v338, %v337
        %v731 = vpack.c.bf16 %v710, %v709
        %v732 = vpack.c.bf16 %v535, %v534
        %v733 = vpack.c.bf16 %v340, %v339
        %v734 = vpack.c.bf16 %v712, %v711
        %v735 = vpack.c.bf16 %v537, %v536
        %v736 = vpack.c.bf16 %v342, %v341
        %v737 = vpack.c.bf16 %v714, %v713
        %v738 = vpack.c.bf16 %v539, %v538
        %v739 = vpack.c.bf16 %v344, %v343
        %v740 = vpack.c.bf16 %v716, %v715
        %v741 = vld [vmem:[#allocation5] sm:$0xf]
        %v742 = vld [vmem:[#allocation5 + $0x4] sm:$0xf]
        %v743 = vld [vmem:[#allocation5 + $0x8] sm:$0xf]
        %v744 = vld [vmem:[#allocation5 + $0xc] sm:$0xf]
        %v745 = vld [vmem:[#allocation5 + $0x10] sm:$0xf]
        %v746 = vld [vmem:[#allocation5 + $0x14] sm:$0xf]
        %v747 = vld [vmem:[#allocation5 + $0x18] sm:$0xf]
        %v748 = vld [vmem:[#allocation5 + $0x1c] sm:$0xf]
        %v749 = vld [vmem:[#allocation5 + $0x20] sm:$0xf]
        %v750 = vld [vmem:[#allocation5 + $0x24] sm:$0xf]
        %v751 = vld [vmem:[#allocation5 + $0x28] sm:$0xf]
        %v752 = vld [vmem:[#allocation5 + $0x2c] sm:$0xf]
        %v753 = vld [vmem:[#allocation5 + $0x30] sm:$0xf]
        %v754 = vld [vmem:[#allocation5 + $0x34] sm:$0xf]
        %v755 = vld [vmem:[#allocation5 + $0x38] sm:$0xf]
        %v756 = vld [vmem:[#allocation5 + $0x3c] sm:$0xf]
        %v757 = vld [vmem:[#allocation5 + $0x40] sm:$0xf]
        %v758 = vld [vmem:[#allocation5 + $0x44] sm:$0xf]
        %v759 = vld [vmem:[#allocation5 + $0x48] sm:$0xf]
        %v760 = vld [vmem:[#allocation5 + $0x4c] sm:$0xf]
        %v761 = vld [vmem:[#allocation5 + $0x50] sm:$0xf]
        %v762 = vld [vmem:[#allocation5 + $0x54] sm:$0xf]
        %v763 = vld [vmem:[#allocation5 + $0x58] sm:$0xf]
        %v764 = vld [vmem:[#allocation5 + $0x5c] sm:$0xf]
        %v765 = vld [vmem:[#allocation5 + $0x60] sm:$0xf]
        %v766 = vld [vmem:[#allocation5 + $0x64] sm:$0xf]
        %v767 = vld [vmem:[#allocation5 + $0x68] sm:$0xf]
        %v768 = vld [vmem:[#allocation5 + $0x6c] sm:$0xf]
        %v769 = vld [vmem:[#allocation5 + $0x70] sm:$0xf]
        %v770 = vld [vmem:[#allocation5 + $0x74] sm:$0xf]
        %v771 = vld [vmem:[#allocation5 + $0x78] sm:$0xf]
        %v772 = vld [vmem:[#allocation5 + $0x7c] sm:$0xf]
        %v773 = vld [vmem:[#allocation5 + $0x80] sm:$0xf]
        %v774 = vld [vmem:[#allocation5 + $0x84] sm:$0xf]
        %v775 = vld [vmem:[#allocation5 + $0x88] sm:$0xf]
        %v776 = vld [vmem:[#allocation5 + $0x8c] sm:$0xf]
        %v777 = vld [vmem:[#allocation5 + $0x90] sm:$0xf]
        %v778 = vld [vmem:[#allocation5 + $0x94] sm:$0xf]
        %v779 = vld [vmem:[#allocation5 + $0x98] sm:$0xf]
        %v780 = vld [vmem:[#allocation5 + $0x9c] sm:$0xf]
        %v781 = vld [vmem:[#allocation5 + $0xa0] sm:$0xf]
        %v782 = vld [vmem:[#allocation5 + $0xa4] sm:$0xf]
        %v783 = vld [vmem:[#allocation5 + $0xa8] sm:$0xf]
        %v784 = vld [vmem:[#allocation5 + $0xac] sm:$0xf]
        %v785 = vld [vmem:[#allocation5 + $0xb0] sm:$0xf]
        %v786 = vld [vmem:[#allocation5 + $0xb4] sm:$0xf]
        %v787 = vld [vmem:[#allocation5 + $0xb8] sm:$0xf]
        %v788 = vld [vmem:[#allocation5 + $0xbc] sm:$0xf]
        %v789 = vld [vmem:[%s3] sm:$0x1]
        %v791 = vperm.slane %v789, 0
        %v841 = vunpack.c.l.b16 %v741
        %v842 = vunpack.c.l.b16 %v742
        %v843 = vunpack.c.l.b16 %v743
        %v844 = vunpack.c.l.b16 %v744
        %v845 = vunpack.c.l.b16 %v745
        %v846 = vunpack.c.l.b16 %v746
        %v847 = vunpack.c.l.b16 %v747
        %v848 = vunpack.c.l.b16 %v748
        %v849 = vunpack.c.l.b16 %v749
        %v850 = vunpack.c.l.b16 %v750
        %v851 = vunpack.c.l.b16 %v751
        %v852 = vunpack.c.l.b16 %v752
        %v853 = vunpack.c.l.b16 %v753
        %v854 = vunpack.c.l.b16 %v754
        %v855 = vunpack.c.l.b16 %v755
        %v856 = vunpack.c.l.b16 %v756
        %v857 = vunpack.c.l.b16 %v757
        %v858 = vunpack.c.l.b16 %v758
        %v859 = vunpack.c.l.b16 %v759
        %v860 = vunpack.c.l.b16 %v760
        %v861 = vunpack.c.l.b16 %v761
        %v862 = vunpack.c.l.b16 %v762
        %v863 = vunpack.c.l.b16 %v763
        %v864 = vunpack.c.l.b16 %v764
        %v865 = vunpack.c.l.b16 %v765
        %v866 = vunpack.c.l.b16 %v766
        %v867 = vunpack.c.l.b16 %v767
        %v868 = vunpack.c.l.b16 %v768
        %v869 = vunpack.c.l.b16 %v769
        %v870 = vunpack.c.l.b16 %v770
        %v871 = vunpack.c.l.b16 %v771
        %v872 = vunpack.c.l.b16 %v772
        %v873 = vunpack.c.l.b16 %v773
        %v874 = vunpack.c.l.b16 %v774
        %v875 = vunpack.c.l.b16 %v775
        %v876 = vunpack.c.l.b16 %v776
        %v877 = vunpack.c.l.b16 %v777
        %v878 = vunpack.c.l.b16 %v778
        %v879 = vunpack.c.l.b16 %v779
        %v880 = vunpack.c.l.b16 %v780
        %v881 = vunpack.c.l.b16 %v781
        %v882 = vunpack.c.l.b16 %v782
        %v883 = vunpack.c.l.b16 %v783
        %v884 = vunpack.c.l.b16 %v784
        %v885 = vunpack.c.l.b16 %v785
        %v886 = vunpack.c.l.b16 %v786
        %v887 = vunpack.c.l.b16 %v787
        %v888 = vunpack.c.l.b16 %v788
        %v889 = vpack.c.b16 %v842, %v841
        %v890 = vpack.c.b16 %v844, %v843
        %v891 = vpack.c.b16 %v846, %v845
        %v892 = vpack.c.b16 %v848, %v847
        %v893 = vpack.c.b16 %v850, %v849
        %v894 = vpack.c.b16 %v852, %v851
        %v895 = vpack.c.b16 %v854, %v853
        %v896 = vpack.c.b16 %v856, %v855
        %v897 = vpack.c.b16 %v858, %v857
        %v898 = vpack.c.b16 %v860, %v859
        %v899 = vpack.c.b16 %v862, %v861
        %v900 = vpack.c.b16 %v864, %v863
        %v901 = vpack.c.b16 %v866, %v865
        %v902 = vpack.c.b16 %v868, %v867
        %v903 = vpack.c.b16 %v870, %v869
        %v904 = vpack.c.b16 %v872, %v871
        %v905 = vpack.c.b16 %v874, %v873
        %v906 = vpack.c.b16 %v876, %v875
        %v907 = vpack.c.b16 %v878, %v877
        %v908 = vpack.c.b16 %v880, %v879
        %v909 = vpack.c.b16 %v882, %v881
        %v910 = vpack.c.b16 %v884, %v883
        %v911 = vpack.c.b16 %v886, %v885
        %v912 = vpack.c.b16 %v888, %v887
        %937 = vmatpush.bf16.msra.mxu0 %v896
        %938 = vmatpush.bf16.msra.mxu0 %v895
        %939 = vmatpush.bf16.msra.mxu0 %v894
        %940 = vmatpush.bf16.msra.mxu0 %v893
        %941 = vmatpush.bf16.msra.mxu0 %v892
        %942 = vmatpush.bf16.msra.mxu0 %v891
        %943 = vmatpush.bf16.msra.mxu0 %v890
        %944 = vmatpush.bf16.msra.mxu0 %v889
        %945 = vmatmul.bf16.gmra.mxu0 %v717
        %v946 = vpop.f32.mrf.mxu0
        %v947 = vadd.f32 %v791, %v946
        %v948 = vpop.f32.mrf.mxu0
        %v949 = vadd.f32 %v791, %v948
        %950 = vmatmul.bf16.gmra.mxu0 %v720
        %v951 = vpop.f32.mrf.mxu0
        %v952 = vadd.f32 %v791, %v951
        %v953 = vpop.f32.mrf.mxu0
        %v954 = vadd.f32 %v791, %v953
        %955 = vmatmul.bf16.gmra.mxu0 %v723
        %v956 = vpop.f32.mrf.mxu0
        %v957 = vadd.f32 %v791, %v956
        %v958 = vpop.f32.mrf.mxu0
        %v959 = vadd.f32 %v791, %v958
        %960 = vmatmul.bf16.gmra.mxu0 %v726
        %v961 = vpop.f32.mrf.mxu0
        %v962 = vadd.f32 %v791, %v961
        %v963 = vpop.f32.mrf.mxu0
        %v964 = vadd.f32 %v791, %v963
        %965 = vmatmul.bf16.gmra.mxu0 %v729
        %v966 = vpop.f32.mrf.mxu0
        %v967 = vadd.f32 %v791, %v966
        %v968 = vpop.f32.mrf.mxu0
        %v969 = vadd.f32 %v791, %v968
        %970 = vmatmul.bf16.gmra.mxu0 %v732
        %v971 = vpop.f32.mrf.mxu0
        %v972 = vadd.f32 %v791, %v971
        %v973 = vpop.f32.mrf.mxu0
        %v974 = vadd.f32 %v791, %v973
        %975 = vmatmul.bf16.gmra.mxu0 %v735
        %v976 = vpop.f32.mrf.mxu0
        %v977 = vadd.f32 %v791, %v976
        %v978 = vpop.f32.mrf.mxu0
        %v979 = vadd.f32 %v791, %v978
        %980 = vmatmul.bf16.gmra.mxu0 %v738
        %v981 = vpop.f32.mrf.mxu0
        %v982 = vadd.f32 %v791, %v981
        %v983 = vpop.f32.mrf.mxu0
        %v984 = vadd.f32 %v791, %v983
        %985 = vdwg.mxu0
        %986 = vmatpush.bf16.msra.mxu0 %v904
        %987 = vmatpush.bf16.msra.mxu0 %v903
        %988 = vmatpush.bf16.msra.mxu0 %v902
        %989 = vmatpush.bf16.msra.mxu0 %v901
        %990 = vmatpush.bf16.msra.mxu0 %v900
        %991 = vmatpush.bf16.msra.mxu0 %v899
        %992 = vmatpush.bf16.msra.mxu0 %v898
        %993 = vmatpush.bf16.msra.mxu0 %v897
        %994 = vmatmul.bf16.gmra.mxu0 %v718
        %v995 = vpop.f32.mrf.mxu0
        %v996 = vadd.f32 %v947, %v995
        %v997 = vpop.f32.mrf.mxu0
        %v998 = vadd.f32 %v949, %v997
        %999 = vmatmul.bf16.gmra.mxu0 %v721
        %v1000 = vpop.f32.mrf.mxu0
        %v1001 = vadd.f32 %v952, %v1000
        %v1002 = vpop.f32.mrf.mxu0
        %v1003 = vadd.f32 %v954, %v1002
        %1004 = vmatmul.bf16.gmra.mxu0 %v724
        %v1005 = vpop.f32.mrf.mxu0
        %v1006 = vadd.f32 %v957, %v1005
        %v1007 = vpop.f32.mrf.mxu0
        %v1008 = vadd.f32 %v959, %v1007
        %1009 = vmatmul.bf16.gmra.mxu0 %v727
        %v1010 = vpop.f32.mrf.mxu0
        %v1011 = vadd.f32 %v962, %v1010
        %v1012 = vpop.f32.mrf.mxu0
        %v1013 = vadd.f32 %v964, %v1012
        %1014 = vmatmul.bf16.gmra.mxu0 %v730
        %v1015 = vpop.f32.mrf.mxu0
        %v1016 = vadd.f32 %v967, %v1015
        %v1017 = vpop.f32.mrf.mxu0
        %v1018 = vadd.f32 %v969, %v1017
        %1019 = vmatmul.bf16.gmra.mxu0 %v733
        %v1020 = vpop.f32.mrf.mxu0
        %v1021 = vadd.f32 %v972, %v1020
        %v1022 = vpop.f32.mrf.mxu0
        %v1023 = vadd.f32 %v974, %v1022
        %1024 = vmatmul.bf16.gmra.mxu0 %v736
        %v1025 = vpop.f32.mrf.mxu0
        %v1026 = vadd.f32 %v977, %v1025
        %v1027 = vpop.f32.mrf.mxu0
        %v1028 = vadd.f32 %v979, %v1027
        %1029 = vmatmul.bf16.gmra.mxu0 %v739
        %v1030 = vpop.f32.mrf.mxu0
        %v1031 = vadd.f32 %v982, %v1030
        %v1032 = vpop.f32.mrf.mxu0
        %v1033 = vadd.f32 %v984, %v1032
        %1034 = vdwg.mxu0
        %1035 = vmatpush.bf16.msra.mxu0 %v912
        %1036 = vmatpush.bf16.msra.mxu0 %v911
        %1037 = vmatpush.bf16.msra.mxu0 %v910
        %1038 = vmatpush.bf16.msra.mxu0 %v909
        %1039 = vmatpush.bf16.msra.mxu0 %v908
        %1040 = vmatpush.bf16.msra.mxu0 %v907
        %1041 = vmatpush.bf16.msra.mxu0 %v906
        %1042 = vmatpush.bf16.msra.mxu0 %v905
        %1043 = vmatmul.bf16.gmra.mxu0 %v719
        %v1044 = vpop.f32.mrf.mxu0
        %v1045 = vadd.f32 %v996, %v1044
        %v1046 = vpop.f32.mrf.mxu0
        %v1047 = vadd.f32 %v998, %v1046
        %1048 = vmatmul.bf16.gmra.mxu0 %v722
        %v1049 = vpop.f32.mrf.mxu0
        %v1050 = vadd.f32 %v1001, %v1049
        %v1051 = vpop.f32.mrf.mxu0
        %v1052 = vadd.f32 %v1003, %v1051
        %1053 = vmatmul.bf16.gmra.mxu0 %v725
        %v1054 = vpop.f32.mrf.mxu0
        %v1055 = vadd.f32 %v1006, %v1054
        %v1056 = vpop.f32.mrf.mxu0
        %v1057 = vadd.f32 %v1008, %v1056
        %1058 = vmatmul.bf16.gmra.mxu0 %v728
        %v1059 = vpop.f32.mrf.mxu0
        %v1060 = vadd.f32 %v1011, %v1059
        %v1061 = vpop.f32.mrf.mxu0
        %v1062 = vadd.f32 %v1013, %v1061
        %1063 = vmatmul.bf16.gmra.mxu0 %v731
        %v1064 = vpop.f32.mrf.mxu0
        %v1065 = vadd.f32 %v1016, %v1064
        %v1066 = vpop.f32.mrf.mxu0
        %v1067 = vadd.f32 %v1018, %v1066
        %1068 = vmatmul.bf16.gmra.mxu0 %v734
        %v1069 = vpop.f32.mrf.mxu0
        %v1070 = vadd.f32 %v1021, %v1069
        %v1071 = vpop.f32.mrf.mxu0
        %v1072 = vadd.f32 %v1023, %v1071
        %1073 = vmatmul.bf16.gmra.mxu0 %v737
        %v1074 = vpop.f32.mrf.mxu0
        %v1075 = vadd.f32 %v1026, %v1074
        %v1076 = vpop.f32.mrf.mxu0
        %v1077 = vadd.f32 %v1028, %v1076
        %1078 = vmatmul.bf16.gmra.mxu0 %v740
        %v1079 = vpop.f32.mrf.mxu0
        %v1080 = vadd.f32 %v1031, %v1079
        %v1081 = vpop.f32.mrf.mxu0
        %v1082 = vadd.f32 %v1033, %v1081
        %1083 = vdwg.mxu0
        %v1084 = vmax.f32 %v1045, 0.0
        %v1085 = vmax.f32 %v1047, 0.0
        %v1086 = vmax.f32 %v1050, 0.0
        %v1087 = vmax.f32 %v1052, 0.0
        %v1088 = vmax.f32 %v1055, 0.0
        %v1089 = vmax.f32 %v1057, 0.0
        %v1090 = vmax.f32 %v1060, 0.0
        %v1091 = vmax.f32 %v1062, 0.0
        %v1092 = vmax.f32 %v1065, 0.0
        %v1093 = vmax.f32 %v1067, 0.0
        %v1094 = vmax.f32 %v1070, 0.0
        %v1095 = vmax.f32 %v1072, 0.0
        %v1096 = vmax.f32 %v1075, 0.0
        %v1097 = vmax.f32 %v1077, 0.0
        %v1098 = vmax.f32 %v1080, 0.0
        %v1099 = vmax.f32 %v1082, 0.0
        %v1100 = vrot.slane %v1084, 7
        %v1101 = vrot.slane %v1085, 7
        %v1102 = vrot.slane %v1086, 7
        %v1103 = vrot.slane %v1087, 7
        %v1104 = vrot.slane %v1088, 7
        %v1105 = vrot.slane %v1089, 7
        %v1106 = vrot.slane %v1090, 7
        %v1107 = vrot.slane %v1091, 7
        %v1108 = vrot.slane %v1092, 7
        %v1109 = vrot.slane %v1093, 7
        %v1110 = vrot.slane %v1094, 7
        %v1111 = vrot.slane %v1095, 7
        %v1112 = vrot.slane %v1096, 7
        %v1113 = vrot.slane %v1097, 7
        %v1114 = vrot.slane %v1098, 7
        %v1115 = vrot.slane %v1099, 7
        %v1116 = vsel %vm379, %v1114, %v1115
        %v1117 = vsel %vm379, %v1113, %v1114
        %v1118 = vsel %vm379, %v1112, %v1113
        %v1119 = vsel %vm379, %v1111, %v1112
        %v1120 = vsel %vm379, %v1110, %v1111
        %v1121 = vsel %vm379, %v1109, %v1110
        %v1122 = vsel %vm379, %v1108, %v1109
        %v1123 = vsel %vm379, %v1107, %v1108
        %v1124 = vsel %vm379, %v1106, %v1107
        %v1125 = vsel %vm379, %v1105, %v1106
        %v1126 = vsel %vm379, %v1104, %v1105
        %v1127 = vsel %vm379, %v1103, %v1104
        %v1128 = vsel %vm379, %v1102, %v1103
        %v1129 = vsel %vm379, %v1101, %v1102
        %v1130 = vsel %vm379, %v1100, %v1101
        %v1131 = vsel %vm379, %v1115, %v1100
        %v1132 = vsel %vm508, %v1131, 0.0
        %v1133 = vsel %vm509, %v1130, 0.0
        %v1134 = vsel %vm510, %v1129, 0.0
        %v1135 = vsel %vm511, %v1128, 0.0
        %v1136 = vsel %vm512, %v1127, 0.0
        %v1137 = vsel %vm513, %v1126, 0.0
        %v1138 = vsel %vm514, %v1125, 0.0
        %v1139 = vsel %vm515, %v1124, 0.0
        %v1140 = vsel %vm516, %v1123, 0.0
        %v1141 = vsel %vm517, %v1122, 0.0
        %v1142 = vsel %vm518, %v1121, 0.0
        %v1143 = vsel %vm519, %v1120, 0.0
        %v1144 = vsel %vm520, %v1119, 0.0
        %v1145 = vsel %vm521, %v1118, 0.0
        %v1146 = vsel %vm522, %v1117, 0.0
        %v1147 = vsel %vm523, %v1116, 0.0
        %v1148 = vrot.slane %v1084, 1
        %v1149 = vrot.slane %v1085, 1
        %v1150 = vrot.slane %v1086, 1
        %v1151 = vrot.slane %v1087, 1
        %v1152 = vrot.slane %v1088, 1
        %v1153 = vrot.slane %v1089, 1
        %v1154 = vrot.slane %v1090, 1
        %v1155 = vrot.slane %v1091, 1
        %v1156 = vrot.slane %v1092, 1
        %v1157 = vrot.slane %v1093, 1
        %v1158 = vrot.slane %v1094, 1
        %v1159 = vrot.slane %v1095, 1
        %v1160 = vrot.slane %v1096, 1
        %v1161 = vrot.slane %v1097, 1
        %v1162 = vrot.slane %v1098, 1
        %v1163 = vrot.slane %v1099, 1
        %v1164 = vsel %vm556, %v1162, %v1163
        %v1165 = vsel %vm556, %v1161, %v1162
        %v1166 = vsel %vm556, %v1160, %v1161
        %v1167 = vsel %vm556, %v1159, %v1160
        %v1168 = vsel %vm556, %v1158, %v1159
        %v1169 = vsel %vm556, %v1157, %v1158
        %v1170 = vsel %vm556, %v1156, %v1157
        %v1171 = vsel %vm556, %v1155, %v1156
        %v1172 = vsel %vm556, %v1154, %v1155
        %v1173 = vsel %vm556, %v1153, %v1154
        %v1174 = vsel %vm556, %v1152, %v1153
        %v1175 = vsel %vm556, %v1151, %v1152
        %v1176 = vsel %vm556, %v1150, %v1151
        %v1177 = vsel %vm556, %v1149, %v1150
        %v1178 = vsel %vm556, %v1148, %v1149
        %v1179 = vsel %vm556, %v1163, %v1148
        %v1180 = vsel %vm685, %v1178, 0.0
        %v1181 = vsel %vm686, %v1177, 0.0
        %v1182 = vsel %vm687, %v1176, 0.0
        %v1183 = vsel %vm688, %v1175, 0.0
        %v1184 = vsel %vm689, %v1174, 0.0
        %v1185 = vsel %vm690, %v1173, 0.0
        %v1186 = vsel %vm691, %v1172, 0.0
        %v1187 = vsel %vm692, %v1171, 0.0
        %v1188 = vsel %vm693, %v1170, 0.0
        %v1189 = vsel %vm694, %v1169, 0.0
        %v1190 = vsel %vm695, %v1168, 0.0
        %v1191 = vsel %vm696, %v1167, 0.0
        %v1192 = vsel %vm697, %v1166, 0.0
        %v1193 = vsel %vm698, %v1165, 0.0
        %v1194 = vsel %vm699, %v1164, 0.0
        %v1195 = vsel %vm700, %v1179, 0.0
        %v1196 = vpack.c.bf16 %v1133, %v1132
        %v1197 = vpack.c.bf16 %v1085, %v1084
        %v1198 = vpack.c.bf16 %v1181, %v1180
        %v1199 = vpack.c.bf16 %v1135, %v1134
        %v1200 = vpack.c.bf16 %v1087, %v1086
        %v1201 = vpack.c.bf16 %v1183, %v1182
        %v1202 = vpack.c.bf16 %v1137, %v1136
        %v1203 = vpack.c.bf16 %v1089, %v1088
        %v1204 = vpack.c.bf16 %v1185, %v1184
        %v1205 = vpack.c.bf16 %v1139, %v1138
        %v1206 = vpack.c.bf16 %v1091, %v1090
        %v1207 = vpack.c.bf16 %v1187, %v1186
        %v1208 = vpack.c.bf16 %v1141, %v1140
        %v1209 = vpack.c.bf16 %v1093, %v1092
        %v1210 = vpack.c.bf16 %v1189, %v1188
        %v1211 = vpack.c.bf16 %v1143, %v1142
        %v1212 = vpack.c.bf16 %v1095, %v1094
        %v1213 = vpack.c.bf16 %v1191, %v1190
        %v1214 = vpack.c.bf16 %v1145, %v1144
        %v1215 = vpack.c.bf16 %v1097, %v1096
        %v1216 = vpack.c.bf16 %v1193, %v1192
        %v1217 = vpack.c.bf16 %v1147, %v1146
        %v1218 = vpack.c.bf16 %v1099, %v1098
        %v1219 = vpack.c.bf16 %v1195, %v1194
        %v1220 = vld [vmem:[%s4] sm:$0xf]
        %v1221 = vld [vmem:[%s4 + $0x4] sm:$0xf]
        %v1222 = vld [vmem:[%s4 + $0x8] sm:$0xf]
        %v1223 = vld [vmem:[%s4 + $0xc] sm:$0xf]
        %v1224 = vld [vmem:[%s4 + $0x10] sm:$0xf]
        %v1225 = vld [vmem:[%s4 + $0x14] sm:$0xf]
        %v1226 = vld [vmem:[%s4 + $0x18] sm:$0xf]
        %v1227 = vld [vmem:[%s4 + $0x1c] sm:$0xf]
        %v1228 = vld [vmem:[%s4 + $0x20] sm:$0xf]
        %v1229 = vld [vmem:[%s4 + $0x24] sm:$0xf]
        %v1230 = vld [vmem:[%s4 + $0x28] sm:$0xf]
        %v1231 = vld [vmem:[%s4 + $0x2c] sm:$0xf]
        %v1232 = vld [vmem:[%s4 + $0x30] sm:$0xf]
        %v1233 = vld [vmem:[%s4 + $0x34] sm:$0xf]
        %v1234 = vld [vmem:[%s4 + $0x38] sm:$0xf]
        %v1235 = vld [vmem:[%s4 + $0x3c] sm:$0xf]
        %v1236 = vld [vmem:[%s4 + $0x40] sm:$0xf]
        %v1237 = vld [vmem:[%s4 + $0x44] sm:$0xf]
        %v1238 = vld [vmem:[%s4 + $0x48] sm:$0xf]
        %v1239 = vld [vmem:[%s4 + $0x4c] sm:$0xf]
        %v1240 = vld [vmem:[%s4 + $0x50] sm:$0xf]
        %v1241 = vld [vmem:[%s4 + $0x54] sm:$0xf]
        %v1242 = vld [vmem:[%s4 + $0x58] sm:$0xf]
        %v1243 = vld [vmem:[%s4 + $0x5c] sm:$0xf]
        %v1244 = vld [vmem:[%s4 + $0x60] sm:$0xf]
        %v1245 = vld [vmem:[%s4 + $0x64] sm:$0xf]
        %v1246 = vld [vmem:[%s4 + $0x68] sm:$0xf]
        %v1247 = vld [vmem:[%s4 + $0x6c] sm:$0xf]
        %v1248 = vld [vmem:[%s4 + $0x70] sm:$0xf]
        %v1249 = vld [vmem:[%s4 + $0x74] sm:$0xf]
        %v1250 = vld [vmem:[%s4 + $0x78] sm:$0xf]
        %v1251 = vld [vmem:[%s4 + $0x7c] sm:$0xf]
        %v1252 = vld [vmem:[%s4 + $0x80] sm:$0xf]
        %v1253 = vld [vmem:[%s4 + $0x84] sm:$0xf]
        %v1254 = vld [vmem:[%s4 + $0x88] sm:$0xf]
        %v1255 = vld [vmem:[%s4 + $0x8c] sm:$0xf]
        %v1256 = vld [vmem:[%s4 + $0x90] sm:$0xf]
        %v1257 = vld [vmem:[%s4 + $0x94] sm:$0xf]
        %v1258 = vld [vmem:[%s4 + $0x98] sm:$0xf]
        %v1259 = vld [vmem:[%s4 + $0x9c] sm:$0xf]
        %v1260 = vld [vmem:[%s4 + $0xa0] sm:$0xf]
        %v1261 = vld [vmem:[%s4 + $0xa4] sm:$0xf]
        %v1262 = vld [vmem:[%s4 + $0xa8] sm:$0xf]
        %v1263 = vld [vmem:[%s4 + $0xac] sm:$0xf]
        %v1264 = vld [vmem:[%s4 + $0xb0] sm:$0xf]
        %v1265 = vld [vmem:[%s4 + $0xb4] sm:$0xf]
        %v1266 = vld [vmem:[%s4 + $0xb8] sm:$0xf]
        %v1267 = vld [vmem:[%s4 + $0xbc] sm:$0xf]
        %v1268 = vld [vmem:[%s4 + $0xc0] sm:$0xf]
        %v1269 = vld [vmem:[%s4 + $0xc4] sm:$0xf]
        %v1270 = vld [vmem:[%s4 + $0xc8] sm:$0xf]
        %v1271 = vld [vmem:[%s4 + $0xcc] sm:$0xf]
        %v1272 = vld [vmem:[%s4 + $0xd0] sm:$0xf]
        %v1273 = vld [vmem:[%s4 + $0xd4] sm:$0xf]
        %v1274 = vld [vmem:[%s4 + $0xd8] sm:$0xf]
        %v1275 = vld [vmem:[%s4 + $0xdc] sm:$0xf]
        %v1276 = vld [vmem:[%s4 + $0xe0] sm:$0xf]
        %v1277 = vld [vmem:[%s4 + $0xe4] sm:$0xf]
        %v1278 = vld [vmem:[%s4 + $0xe8] sm:$0xf]
        %v1279 = vld [vmem:[%s4 + $0xec] sm:$0xf]
        %v1280 = vld [vmem:[%s4 + $0xf0] sm:$0xf]
        %v1281 = vld [vmem:[%s4 + $0xf4] sm:$0xf]
        %v1282 = vld [vmem:[%s4 + $0xf8] sm:$0xf]
        %v1283 = vld [vmem:[%s4 + $0xfc] sm:$0xf]
        %v1284 = vld [vmem:[%s5] sm:$0x1]
        %v1286 = vperm.slane %v1284, 0
        %v1352 = vunpack.c.l.b16 %v1220
        %v1353 = vunpack.c.l.b16 %v1221
        %v1354 = vunpack.c.l.b16 %v1222
        %v1355 = vunpack.c.l.b16 %v1223
        %v1356 = vunpack.c.l.b16 %v1224
        %v1357 = vunpack.c.l.b16 %v1225
        %v1358 = vunpack.c.l.b16 %v1226
        %v1359 = vunpack.c.l.b16 %v1227
        %v1360 = vunpack.c.l.b16 %v1228
        %v1361 = vunpack.c.l.b16 %v1229
        %v1362 = vunpack.c.l.b16 %v1230
        %v1363 = vunpack.c.l.b16 %v1231
        %v1364 = vunpack.c.l.b16 %v1232
        %v1365 = vunpack.c.l.b16 %v1233
        %v1366 = vunpack.c.l.b16 %v1234
        %v1367 = vunpack.c.l.b16 %v1235
        %v1368 = vunpack.c.l.b16 %v1236
        %v1369 = vunpack.c.l.b16 %v1237
        %v1370 = vunpack.c.l.b16 %v1238
        %v1371 = vunpack.c.l.b16 %v1239
        %v1372 = vunpack.c.l.b16 %v1240
        %v1373 = vunpack.c.l.b16 %v1241
        %v1374 = vunpack.c.l.b16 %v1242
        %v1375 = vunpack.c.l.b16 %v1243
        %v1376 = vunpack.c.l.b16 %v1244
        %v1377 = vunpack.c.l.b16 %v1245
        %v1378 = vunpack.c.l.b16 %v1246
        %v1379 = vunpack.c.l.b16 %v1247
        %v1380 = vunpack.c.l.b16 %v1248
        %v1381 = vunpack.c.l.b16 %v1249
        %v1382 = vunpack.c.l.b16 %v1250
        %v1383 = vunpack.c.l.b16 %v1251
        %v1384 = vunpack.c.l.b16 %v1252
        %v1385 = vunpack.c.l.b16 %v1253
        %v1386 = vunpack.c.l.b16 %v1254
        %v1387 = vunpack.c.l.b16 %v1255
        %v1388 = vunpack.c.l.b16 %v1256
        %v1389 = vunpack.c.l.b16 %v1257
        %v1390 = vunpack.c.l.b16 %v1258
        %v1391 = vunpack.c.l.b16 %v1259
        %v1392 = vunpack.c.l.b16 %v1260
        %v1393 = vunpack.c.l.b16 %v1261
        %v1394 = vunpack.c.l.b16 %v1262
        %v1395 = vunpack.c.l.b16 %v1263
        %v1396 = vunpack.c.l.b16 %v1264
        %v1397 = vunpack.c.l.b16 %v1265
        %v1398 = vunpack.c.l.b16 %v1266
        %v1399 = vunpack.c.l.b16 %v1267
        %v1400 = vunpack.c.l.b16 %v1268
        %v1401 = vunpack.c.l.b16 %v1269
        %v1402 = vunpack.c.l.b16 %v1270
        %v1403 = vunpack.c.l.b16 %v1271
        %v1404 = vunpack.c.l.b16 %v1272
        %v1405 = vunpack.c.l.b16 %v1273
        %v1406 = vunpack.c.l.b16 %v1274
        %v1407 = vunpack.c.l.b16 %v1275
        %v1408 = vunpack.c.l.b16 %v1276
        %v1409 = vunpack.c.l.b16 %v1277
        %v1410 = vunpack.c.l.b16 %v1278
        %v1411 = vunpack.c.l.b16 %v1279
        %v1412 = vunpack.c.l.b16 %v1280
        %v1413 = vunpack.c.l.b16 %v1281
        %v1414 = vunpack.c.l.b16 %v1282
        %v1415 = vunpack.c.l.b16 %v1283
        %v1416 = vpack.c.b16 %v1353, %v1352
        %v1417 = vpack.c.b16 %v1355, %v1354
        %v1418 = vpack.c.b16 %v1357, %v1356
        %v1419 = vpack.c.b16 %v1359, %v1358
        %v1420 = vpack.c.b16 %v1361, %v1360
        %v1421 = vpack.c.b16 %v1363, %v1362
        %v1422 = vpack.c.b16 %v1365, %v1364
        %v1423 = vpack.c.b16 %v1367, %v1366
        %v1424 = vpack.c.b16 %v1369, %v1368
        %v1425 = vpack.c.b16 %v1371, %v1370
        %v1426 = vpack.c.b16 %v1373, %v1372
        %v1427 = vpack.c.b16 %v1375, %v1374
        %v1428 = vpack.c.b16 %v1377, %v1376
        %v1429 = vpack.c.b16 %v1379, %v1378
        %v1430 = vpack.c.b16 %v1381, %v1380
        %v1431 = vpack.c.b16 %v1383, %v1382
        %v1432 = vpack.c.b16 %v1385, %v1384
        %v1433 = vpack.c.b16 %v1387, %v1386
        %v1434 = vpack.c.b16 %v1389, %v1388
        %v1435 = vpack.c.b16 %v1391, %v1390
        %v1436 = vpack.c.b16 %v1393, %v1392
        %v1437 = vpack.c.b16 %v1395, %v1394
        %v1438 = vpack.c.b16 %v1397, %v1396
        %v1439 = vpack.c.b16 %v1399, %v1398
        %v1440 = vpack.c.b16 %v1401, %v1400
        %v1441 = vpack.c.b16 %v1403, %v1402
        %v1442 = vpack.c.b16 %v1405, %v1404
        %v1443 = vpack.c.b16 %v1407, %v1406
        %v1444 = vpack.c.b16 %v1409, %v1408
        %v1445 = vpack.c.b16 %v1411, %v1410
        %v1446 = vpack.c.b16 %v1413, %v1412
        %v1447 = vpack.c.b16 %v1415, %v1414
        %1480 = vmatpush.bf16.msra.mxu0 %v1423
        %1481 = vmatpush.bf16.msra.mxu0 %v1422
        %1482 = vmatpush.bf16.msra.mxu0 %v1421
        %1483 = vmatpush.bf16.msra.mxu0 %v1420
        %1484 = vmatpush.bf16.msra.mxu0 %v1419
        %1485 = vmatpush.bf16.msra.mxu0 %v1418
        %1486 = vmatpush.bf16.msra.mxu0 %v1417
        %1487 = vmatpush.bf16.msra.mxu0 %v1416
        %1488 = vmatmul.bf16.gmra.mxu0 %v1196
        %v1489 = vpop.f32.mrf.mxu0
        %v1490 = vadd.f32 %v1286, %v1489
        %v1491 = vpop.f32.mrf.mxu0
        %v1492 = vadd.f32 %v1286, %v1491
        %1493 = vmatmul.bf16.gmra.mxu0 %v1199
        %v1494 = vpop.f32.mrf.mxu0
        %v1495 = vadd.f32 %v1286, %v1494
        %v1496 = vpop.f32.mrf.mxu0
        %v1497 = vadd.f32 %v1286, %v1496
        %1498 = vmatmul.bf16.gmra.mxu0 %v1202
        %v1499 = vpop.f32.mrf.mxu0
        %v1500 = vadd.f32 %v1286, %v1499
        %v1501 = vpop.f32.mrf.mxu0
        %v1502 = vadd.f32 %v1286, %v1501
        %1503 = vmatmul.bf16.gmra.mxu0 %v1205
        %v1504 = vpop.f32.mrf.mxu0
        %v1505 = vadd.f32 %v1286, %v1504
        %v1506 = vpop.f32.mrf.mxu0
        %v1507 = vadd.f32 %v1286, %v1506
        %1508 = vmatmul.bf16.gmra.mxu0 %v1208
        %v1509 = vpop.f32.mrf.mxu0
        %v1510 = vadd.f32 %v1286, %v1509
        %v1511 = vpop.f32.mrf.mxu0
        %v1512 = vadd.f32 %v1286, %v1511
        %1513 = vmatmul.bf16.gmra.mxu0 %v1211
        %v1514 = vpop.f32.mrf.mxu0
        %v1515 = vadd.f32 %v1286, %v1514
        %v1516 = vpop.f32.mrf.mxu0
        %v1517 = vadd.f32 %v1286, %v1516
        %1518 = vmatmul.bf16.gmra.mxu0 %v1214
        %v1519 = vpop.f32.mrf.mxu0
        %v1520 = vadd.f32 %v1286, %v1519
        %v1521 = vpop.f32.mrf.mxu0
        %v1522 = vadd.f32 %v1286, %v1521
        %1523 = vmatmul.bf16.gmra.mxu0 %v1217
        %v1524 = vpop.f32.mrf.mxu0
        %v1525 = vadd.f32 %v1286, %v1524
        %v1526 = vpop.f32.mrf.mxu0
        %v1527 = vadd.f32 %v1286, %v1526
        %1528 = vdwg.mxu0
        %1529 = vmatpush.bf16.msra.mxu0 %v1431
        %1530 = vmatpush.bf16.msra.mxu0 %v1430
        %1531 = vmatpush.bf16.msra.mxu0 %v1429
        %1532 = vmatpush.bf16.msra.mxu0 %v1428
        %1533 = vmatpush.bf16.msra.mxu0 %v1427
        %1534 = vmatpush.bf16.msra.mxu0 %v1426
        %1535 = vmatpush.bf16.msra.mxu0 %v1425
        %1536 = vmatpush.bf16.msra.mxu0 %v1424
        %1537 = vmatmul.bf16.gmra.mxu0 %v1197
        %v1538 = vpop.f32.mrf.mxu0
        %v1539 = vadd.f32 %v1490, %v1538
        %v1540 = vpop.f32.mrf.mxu0
        %v1541 = vadd.f32 %v1492, %v1540
        %1542 = vmatmul.bf16.gmra.mxu0 %v1200
        %v1543 = vpop.f32.mrf.mxu0
        %v1544 = vadd.f32 %v1495, %v1543
        %v1545 = vpop.f32.mrf.mxu0
        %v1546 = vadd.f32 %v1497, %v1545
        %1547 = vmatmul.bf16.gmra.mxu0 %v1203
        %v1548 = vpop.f32.mrf.mxu0
        %v1549 = vadd.f32 %v1500, %v1548
        %v1550 = vpop.f32.mrf.mxu0
        %v1551 = vadd.f32 %v1502, %v1550
        %1552 = vmatmul.bf16.gmra.mxu0 %v1206
        %v1553 = vpop.f32.mrf.mxu0
        %v1554 = vadd.f32 %v1505, %v1553
        %v1555 = vpop.f32.mrf.mxu0
        %v1556 = vadd.f32 %v1507, %v1555
        %1557 = vmatmul.bf16.gmra.mxu0 %v1209
        %v1558 = vpop.f32.mrf.mxu0
        %v1559 = vadd.f32 %v1510, %v1558
        %v1560 = vpop.f32.mrf.mxu0
        %v1561 = vadd.f32 %v1512, %v1560
        %1562 = vmatmul.bf16.gmra.mxu0 %v1212
        %v1563 = vpop.f32.mrf.mxu0
        %v1564 = vadd.f32 %v1515, %v1563
        %v1565 = vpop.f32.mrf.mxu0
        %v1566 = vadd.f32 %v1517, %v1565
        %1567 = vmatmul.bf16.gmra.mxu0 %v1215
        %v1568 = vpop.f32.mrf.mxu0
        %v1569 = vadd.f32 %v1520, %v1568
        %v1570 = vpop.f32.mrf.mxu0
        %v1571 = vadd.f32 %v1522, %v1570
        %1572 = vmatmul.bf16.gmra.mxu0 %v1218
        %v1573 = vpop.f32.mrf.mxu0
        %v1574 = vadd.f32 %v1525, %v1573
        %v1575 = vpop.f32.mrf.mxu0
        %v1576 = vadd.f32 %v1527, %v1575
        %1577 = vdwg.mxu0
        %1578 = vmatpush.bf16.msra.mxu0 %v1439
        %1579 = vmatpush.bf16.msra.mxu0 %v1438
        %1580 = vmatpush.bf16.msra.mxu0 %v1437
        %1581 = vmatpush.bf16.msra.mxu0 %v1436
        %1582 = vmatpush.bf16.msra.mxu0 %v1435
        %1583 = vmatpush.bf16.msra.mxu0 %v1434
        %1584 = vmatpush.bf16.msra.mxu0 %v1433
        %1585 = vmatpush.bf16.msra.mxu0 %v1432
        %1586 = vmatmul.bf16.gmra.mxu0 %v1198
        %v1587 = vpop.f32.mrf.mxu0
        %v1588 = vadd.f32 %v1539, %v1587
        %v1589 = vpop.f32.mrf.mxu0
        %v1590 = vadd.f32 %v1541, %v1589
        %1591 = vmatmul.bf16.gmra.mxu0 %v1201
        %v1592 = vpop.f32.mrf.mxu0
        %v1593 = vadd.f32 %v1544, %v1592
        %v1594 = vpop.f32.mrf.mxu0
        %v1595 = vadd.f32 %v1546, %v1594
        %1596 = vmatmul.bf16.gmra.mxu0 %v1204
        %v1597 = vpop.f32.mrf.mxu0
        %v1598 = vadd.f32 %v1549, %v1597
        %v1599 = vpop.f32.mrf.mxu0
        %v1600 = vadd.f32 %v1551, %v1599
        %1601 = vmatmul.bf16.gmra.mxu0 %v1207
        %v1602 = vpop.f32.mrf.mxu0
        %v1603 = vadd.f32 %v1554, %v1602
        %v1604 = vpop.f32.mrf.mxu0
        %v1605 = vadd.f32 %v1556, %v1604
        %1606 = vmatmul.bf16.gmra.mxu0 %v1210
        %v1607 = vpop.f32.mrf.mxu0
        %v1608 = vadd.f32 %v1559, %v1607
        %v1609 = vpop.f32.mrf.mxu0
        %v1610 = vadd.f32 %v1561, %v1609
        %1611 = vmatmul.bf16.gmra.mxu0 %v1213
        %v1612 = vpop.f32.mrf.mxu0
        %v1613 = vadd.f32 %v1564, %v1612
        %v1614 = vpop.f32.mrf.mxu0
        %v1615 = vadd.f32 %v1566, %v1614
        %1616 = vmatmul.bf16.gmra.mxu0 %v1216
        %v1617 = vpop.f32.mrf.mxu0
        %v1618 = vadd.f32 %v1569, %v1617
        %v1619 = vpop.f32.mrf.mxu0
        %v1620 = vadd.f32 %v1571, %v1619
        %1621 = vmatmul.bf16.gmra.mxu0 %v1219
        %v1622 = vpop.f32.mrf.mxu0
        %v1623 = vadd.f32 %v1574, %v1622
        %v1624 = vpop.f32.mrf.mxu0
        %v1625 = vadd.f32 %v1576, %v1624
        %1626 = vdwg.mxu0
        %1627 = vmatpush.bf16.msra.mxu0 %v1447
        %1628 = vmatpush.bf16.msra.mxu0 %v1446
        %1629 = vmatpush.bf16.msra.mxu0 %v1445
        %1630 = vmatpush.bf16.msra.mxu0 %v1444
        %1631 = vmatpush.bf16.msra.mxu0 %v1443
        %1632 = vmatpush.bf16.msra.mxu0 %v1442
        %1633 = vmatpush.bf16.msra.mxu0 %v1441
        %1634 = vmatpush.bf16.msra.mxu0 %v1440
        %1635 = vmatmul.bf16.gmra.mxu0 %v718
        %v1636 = vpop.f32.mrf.mxu0
        %v1637 = vadd.f32 %v1588, %v1636
        %v1638 = vpop.f32.mrf.mxu0
        %v1639 = vadd.f32 %v1590, %v1638
        %1640 = vmatmul.bf16.gmra.mxu0 %v721
        %v1641 = vpop.f32.mrf.mxu0
        %v1642 = vadd.f32 %v1593, %v1641
        %v1643 = vpop.f32.mrf.mxu0
        %v1644 = vadd.f32 %v1595, %v1643
        %1645 = vmatmul.bf16.gmra.mxu0 %v724
        %v1646 = vpop.f32.mrf.mxu0
        %v1647 = vadd.f32 %v1598, %v1646
        %v1648 = vpop.f32.mrf.mxu0
        %v1649 = vadd.f32 %v1600, %v1648
        %1650 = vmatmul.bf16.gmra.mxu0 %v727
        %v1651 = vpop.f32.mrf.mxu0
        %v1652 = vadd.f32 %v1603, %v1651
        %v1653 = vpop.f32.mrf.mxu0
        %v1654 = vadd.f32 %v1605, %v1653
        %1655 = vmatmul.bf16.gmra.mxu0 %v730
        %v1656 = vpop.f32.mrf.mxu0
        %v1657 = vadd.f32 %v1608, %v1656
        %v1658 = vpop.f32.mrf.mxu0
        %v1659 = vadd.f32 %v1610, %v1658
        %1660 = vmatmul.bf16.gmra.mxu0 %v733
        %v1661 = vpop.f32.mrf.mxu0
        %v1662 = vadd.f32 %v1613, %v1661
        %v1663 = vpop.f32.mrf.mxu0
        %v1664 = vadd.f32 %v1615, %v1663
        %1665 = vmatmul.bf16.gmra.mxu0 %v736
        %v1666 = vpop.f32.mrf.mxu0
        %v1667 = vadd.f32 %v1618, %v1666
        %v1668 = vpop.f32.mrf.mxu0
        %v1669 = vadd.f32 %v1620, %v1668
        %1670 = vmatmul.bf16.gmra.mxu0 %v739
        %v1671 = vpop.f32.mrf.mxu0
        %v1672 = vadd.f32 %v1623, %v1671
        %v1673 = vpop.f32.mrf.mxu0
        %v1674 = vadd.f32 %v1625, %v1673
        %1675 = vdwg.mxu0
        %v1676 = vmax.f32 %v1637, 0.0
        %v1677 = vmax.f32 %v1639, 0.0
        %v1678 = vmax.f32 %v1642, 0.0
        %v1679 = vmax.f32 %v1644, 0.0
        %v1680 = vmax.f32 %v1647, 0.0
        %v1681 = vmax.f32 %v1649, 0.0
        %v1682 = vmax.f32 %v1652, 0.0
        %v1683 = vmax.f32 %v1654, 0.0
        %v1684 = vmax.f32 %v1657, 0.0
        %v1685 = vmax.f32 %v1659, 0.0
        %v1686 = vmax.f32 %v1662, 0.0
        %v1687 = vmax.f32 %v1664, 0.0
        %v1688 = vmax.f32 %v1667, 0.0
        %v1689 = vmax.f32 %v1669, 0.0
        %v1690 = vmax.f32 %v1672, 0.0
        %v1691 = vmax.f32 %v1674, 0.0
        %1692 = vst [vmem:[%s304] sm:$0xff] %v1676
        %1693 = vst [vmem:[%s304 + $0x8] sm:$0xff] %v1677
        %1694 = vst [vmem:[%s304 + $0x10] sm:$0xff] %v1678
        %1695 = vst [vmem:[%s304 + $0x18] sm:$0xff] %v1679
        %1696 = vst [vmem:[%s304 + $0x20] sm:$0xff] %v1680
        %1697 = vst [vmem:[%s304 + $0x28] sm:$0xff] %v1681
        %1698 = vst [vmem:[%s304 + $0x30] sm:$0xff] %v1682
        %1699 = vst [vmem:[%s304 + $0x38] sm:$0xff] %v1683
        %1700 = vst [vmem:[%s304 + $0x40] sm:$0xff] %v1684
        %1701 = vst [vmem:[%s304 + $0x48] sm:$0xff] %v1685
        %1702 = vst [vmem:[%s304 + $0x50] sm:$0xff] %v1686
        %1703 = vst [vmem:[%s304 + $0x58] sm:$0xff] %v1687
        %1704 = vst [vmem:[%s304 + $0x60] sm:$0xff] %v1688
        %1705 = vst [vmem:[%s304 + $0x68] sm:$0xff] %v1689
        %1706 = vst [vmem:[%s304 + $0x70] sm:$0xff] %v1690
        %1707 = vst [vmem:[%s304 + $0x78] sm:$0xff] %v1691
        %s1708 = sand.u32 %s168, 1
        %s1709 = scalar_lea.sflag [#allocation4], %s1708
        %s1710 = sand.u32 %s168, 1
        %s1711 = smul.addr %s1710, 128
        %s1712 = scalar_lea.vmem [#allocation7], %s1711
        // Predicated region
        $region53: #{tpu_custom_call.1} parent=43 // pred_check
          %p1713 = pneg %p178
        $region54: #{tpu_custom_call.1} parent=43 // pred_check_branch
          %1715 = sbr.rel (%p1713) target = $region56
        $region55: #{tpu_custom_call.1} parent=43 // pred_region
          %s1716 = smul.u32 16, %s24
          %1718 = vsyncadd %s1709, 0
          %s1719 = smul.addr %s1716, 8
          %s1720 = scalar_lea.hbm %s6, %s1719
          %s1721 = sshll.u32 %s1712, 4
          %s1722 = int_to_ptr.vmem [resolvable:$true] %s1721
          %s1723 = sshll.u32 %s1720, 4
          %s1724 = int_to_ptr.hbm [resolvable:$true] %s1723
          %1729 = dma.vmem_to_hbm [thread:$0]  %s1722, 2048, %s1724, %s1709, 128, 128, 8
        $region56: #{tpu_custom_call.1} parent=43 // pred_fallthru
          _
      $region44: #{tpu_custom_call.1} parent=5 // pred_fallthru
        _
      %p1730 = scmp.le.s32.totalorder 2, %s19
      // Predicated region
      $region57: #{tpu_custom_call.1} parent=5 // pred_check
        %p1731 = pneg %p1730
      $region58: #{tpu_custom_call.1} parent=5 // pred_check_branch
        %1733 = sbr.rel (%p1731) target = $region60
      $region59: #{tpu_custom_call.1} parent=5 // pred_region
        %s1734 = ssub.s32 %s19, 2
        // Predicated region
        $region61: #{tpu_custom_call.1} parent=59 // pred_check
          %p1735 = pneg %p184
        $region62: #{tpu_custom_call.1} parent=59 // pred_check_branch
          %1737 = sbr.rel (%p1735) target = $region64
        $region63: #{tpu_custom_call.1} parent=59 // pred_region
          %s1738 = sand.u32 %s169, 1
          %s1739 = scalar_lea.sflag [#allocation4], %s1738
          %s1740 = sand.u32 %s169, 1
          %s1741 = smul.addr %s1740, 128
          %s1742 = scalar_lea.vmem [#allocation7], %s1741
          %1744 = dma.done %s1739, 2048
        $region64: #{tpu_custom_call.1} parent=59 // pred_fallthru
          _
      $region60: #{tpu_custom_call.1} parent=5 // pred_fallthru
        _
    $region6: #{tpu_custom_call.1} parent=1 // loop_footer
      %s23 = sadd.s32 1, %s19
    $region7: #{tpu_custom_call.1} parent=1 // loop_footer_branch
      %18 = sbr.rel target = $region3
    $region8: #{tpu_custom_call.1} parent=1 // loop_exit
      _
    %1745 = vsyncpa [#allocation3], 1
    %s1746 = scalar_lea.sflag [#allocation3], 1
    %1747 = vsyncpa %s1746, 1
    %1748 = vsyncpa [#allocation6], 1
    %1749 = vsyncpa [#allocation4], 1
    %s1750 = scalar_lea.sflag [#allocation4], 1
    %1751 = vsyncpa %s1750, 1

</llo_original>
